<compile_context>
chip_gen: v5e
topology: v5e:2x2
jax: 0.10.0
libtpu: 0.0.40
codegen_flags: <defaults>
</compile_context>

<pallas_src>
import functools

import jax
import jax.numpy as jnp
import numpy as np
from jax.experimental import pallas as pl
from jax.experimental.pallas import tpu as pltpu


def closest_factors(n):
    factor = int(n ** 0.5)
    while n % factor != 0:
        factor -= 1
    return (max(factor, n // factor), min(factor, n // factor))


# ----------------------------- fused Pallas kernel ---------------------------
def _speech_embedding_kernel(xr_ref, w1_ref, b1_ref, w2_ref, b2_ref, wl_ref, bl_ref,
                             o_ref, y1_ref, *, ts2, fs2):
    """One batch element: conv1+ReLU -> conv2+ReLU -> Linear, fused in VMEM.

    xr_ref : (TR, ts1*F)        f32   time-reshaped input (ts1 frames per row)
    w1_ref : (G*ts1*F, F1*C)    f32   conv1 weights, one (ts1*F, F1*C) slab per row-shift
    w2_ref : (9*C, C)           bf16  conv2 compact per-tap weights (cin, cout)
    wl_ref : (F2*C, C)          bf16  linear weights, rows pre-permuted to (f2, c)
    b1_ref : (1, F1*C) f32 | b2_ref: (1, C) f32 | bl_ref: (1, C) f32
    o_ref  : (T2, C)            f32   output block (batch dim squeezed)
    y1_ref : (T1, F1*C)         bf16  VMEM scratch (conv1 activation, never hits HBM)
    """
    f32 = jnp.float32
    T1, F1C = y1_ref.shape
    T2, Cout = o_ref.shape
    C = b2_ref.shape[-1]
    SF = xr_ref.shape[-1]                     # ts1 * F
    G = w1_ref.shape[0] // SF                 # number of row-shift groups
    F2 = wl_ref.shape[0] // C

    # ---- conv1 (+bias, ReLU): time taps folded into K, feature taps folded into
    # the (F, F1*C) band columns.  Contiguous sublane-shifted reads only.
    acc1 = jnp.zeros((T1, F1C), f32)
    for d in range(G):
        xg = xr_ref[pl.ds(d, T1), :]                                  # (T1, ts1*F) f32
        w1g = w1_ref[pl.ds(d * SF, SF), :]                            # (ts1*F, F1*C)
        acc1 = acc1 + jnp.dot(xg, w1g, preferred_element_type=f32)
    y1_ref[...] = jnp.maximum(acc1 + b1_ref[...], 0.0).astype(y1_ref.dtype)

    # ---- conv2 (+bias, ReLU) fused with the output Linear, per output feature f2.
    # Compact K=C tap matmuls: zero wasted MXU FLOPs, no zero-padded band weights.
    if ts2 == 1:
        def tap(i, f1):
            return y1_ref[pl.ds(i, T2), pl.ds(f1 * C, C)]             # (T2, C) bf16
    else:
        z = y1_ref[...]
        def tap(i, f1):
            # TODO(synk): strided value-slice fallback for ts2 > 1 (time_stride >= 4
            #             after factorization); ts2 == 1 uses the contiguous fast path.
            return jax.lax.slice(z, (i, f1 * C),
                                 (i + (T2 - 1) * ts2 + 1, (f1 + 1) * C), (ts2, 1))

    out = jnp.zeros((T2, Cout), f32) + bl_ref[...]
    for f2 in range(F2):
        acc2 = jnp.zeros((T2, C), f32)
        for i in range(3):
            for j in range(3):
                f1 = f2 * fs2 + j
                w2t = w2_ref[pl.ds((3 * i + j) * C, C), :]            # (C, C) bf16
                acc2 = acc2 + jnp.dot(tap(i, f1), w2t, preferred_element_type=f32)
        y2 = jnp.maximum(acc2 + b2_ref[...], 0.0).astype(wl_ref.dtype)
        wlb = wl_ref[pl.ds(f2 * C, C), :]                             # (C, Cout) bf16
        out = out + jnp.dot(y2, wlb, preferred_element_type=f32)
    o_ref[...] = out.astype(o_ref.dtype)


# ------------------------------- parameters ----------------------------------
def init_speech_embedding_params(key, input_dim, output_dim, time_stride, feature_stride):
    tstride1, tstride2 = closest_factors(time_stride)
    fstride1, fstride2 = closest_factors(feature_stride)
    conv_out_dim = (input_dim - 3) // fstride1 + 1
    conv_out_dim = (conv_out_dim - 3) // fstride2 + 1
    conv_out_dim = output_dim * conv_out_dim

    k1, k2, k3, k4, k5, k6 = jax.random.split(key, 6)
    params = {
        # conv1: Conv2d(1, C, 3, stride=(tstride1, fstride1))   (PyTorch OIHW)
        "w1": jax.random.normal(k1, (output_dim, 1, 3, 3), jnp.float32) * 0.1,
        "b1": jax.random.normal(k2, (output_dim,), jnp.float32) * 0.1,
        # conv2: Conv2d(C, C, 3, stride=(tstride2, fstride2))
        "w2": jax.random.normal(k3, (output_dim, output_dim, 3, 3), jnp.float32) * 0.1,
        "b2": jax.random.normal(k4, (output_dim,), jnp.float32) * 0.1,
        # out: Linear(conv_out_dim, C), stored as (in, out) = torch_weight.T
        # with the torch input-index ordering k = c*F2 + f2.
        "wl": jax.random.normal(k5, (conv_out_dim, output_dim), jnp.float32) * 0.1,
        "bl": jax.random.normal(k6, (output_dim,), jnp.float32) * 0.1,
    }
    meta = {
        "strides": (tstride1, tstride2, fstride1, fstride2),
        "time_downsampling_factor": tstride1 * tstride2,
        "output_dim": output_dim,
        "input_dim": input_dim,
    }
    return params, meta


def prepare_kernel_weights(params, meta):
    """One-time weight transformation (done at init, NOT per step).

    Folds: (a) conv1's time taps (row-shift groups) + feature taps + channels into
    compact matmul weights, (b) conv2's taps into 9 dense (C, C) blocks, (c) the
    NCHW transpose and the (b,c,t,f)->(b,t,c*f) view into weight-row permutations,
    (d) bf16 casts for the conv2/Linear MXU operands.
    """
    ts1, ts2, fs1, fs2 = meta["strides"]
    C = meta["output_dim"]
    F = meta["input_dim"]
    F1 = (F - 3) // fs1 + 1
    F2 = (F1 - 3) // fs2 + 1
    G = 2 // ts1 + 1                       # number of reshaped-row shifts needed
    SF = ts1 * F

    w1 = np.asarray(params["w1"], np.float32)      # (C, 1, 3, 3)
    w2 = np.asarray(params["w2"], np.float32)      # (C, C, 3, 3)
    wl = np.asarray(params["wl"], np.float32)      # (C*F2, C), rows ordered (c, f2)
    b1 = np.asarray(params["b1"], np.float32)
    b2 = np.asarray(params["b2"], np.float32)
    bl = np.asarray(params["bl"], np.float32)

    # conv1: W1[d, (i - d*ts1)*F + f1*fs1 + j, f1*C + c] = w1[c, 0, i, j]
    W1 = np.zeros((G, SF, F1 * C), np.float32)
    for i in range(3):
        d = i // ts1
        for j in range(3):
            tap = w1[:, 0, i, j]                   # (C,)
            for f1 in range(F1):
                W1[d, (i - d * ts1) * F + f1 * fs1 + j, f1 * C:(f1 + 1) * C] = tap
    W1 = W1.reshape(G * SF, F1 * C)

    # conv2 compact per-tap weights: W2[(3*i+j)*C + cin, cout] = w2[cout, cin, i, j]
    W2 = np.zeros((9 * C, C), np.float32)
    for i in range(3):
        for j in range(3):
            W2[(3 * i + j) * C:(3 * i + j + 1) * C, :] = w2[:, :, i, j].T
    # Linear: permute rows once so the kernel's (f2, c) flattening matches
    # PyTorch's (c, f2) flattening — no activation transpose needed.
    WL = wl.reshape(C, F2, C).transpose(1, 0, 2).reshape(F2 * C, C)

    return {
        "W1": jnp.asarray(W1, jnp.float32),                      # f32 for accuracy
        "b1": jnp.asarray(np.tile(b1, F1)[None, :], jnp.float32),
        "W2": jnp.asarray(W2, jnp.bfloat16),
        "b2": jnp.asarray(b2[None, :], jnp.float32),
        "WL": jnp.asarray(WL, jnp.bfloat16),
        "bl": jnp.asarray(bl[None, :], jnp.float32),
    }


# --------------------------------- forward -----------------------------------
def speech_embedding_forward(kweights, meta, x, x_len):
    """
    x     : (B, T, F) float32
    x_len : (B,) int32
    returns (y, y_len): y (B, T2, output_dim) float32, y_len (B,) int32
    """
    ts1, ts2, fs1, fs2 = meta["strides"]
    C = meta["output_dim"]
    B, T, F = x.shape
    T1 = (T - 3) // ts1 + 1
    T2 = (T1 - 3) // ts2 + 1
    F1 = (F - 3) // fs1 + 1
    F2 = (F1 - 3) // fs2 + 1
    F1C = F1 * C
    G = 2 // ts1 + 1
    SF = ts1 * F

    # Free time-reshape: ts1 consecutive frames per row -> conv1 taps become
    # lane offsets + at most (2//ts1) contiguous sublane shifts.
    TR = T1 + 2 // ts1
    T_pad = TR * ts1
    if T_pad > T:
        x = jnp.pad(x, ((0, 0), (0, T_pad - T), (0, 0)))
    elif T_pad < T:
        x = x[:, :T_pad, :]
    xr = x.reshape(B, TR, SF)

    W1, b1f = kweights["W1"], kweights["b1"]
    W2, b2f = kweights["W2"], kweights["b2"]
    WL, blf = kweights["WL"], kweights["bl"]

    kern = functools.partial(_speech_embedding_kernel, ts2=ts2, fs2=fs2)

    # Honest cost estimate (true matmul work, no zero-padded bands on the big GEMMs).
    flops = 2 * B * (T1 * G * SF * F1C            # conv1 (band over features only)
                     + T2 * F2 * 9 * C * C        # conv2 compact taps
                     + T2 * F2 * C * C)           # fused Linear
    weight_bytes = (int(W1.size) * 4 + int(W2.size) * 2 + int(WL.size) * 2
                    + int(b1f.size + b2f.size + blf.size) * 4)
    bytes_accessed = B * (TR * SF * 4 + T2 * C * 4) + weight_bytes

    # VMEM budget: single-buffered weights + double-buffered in/out blocks +
    # bf16 conv1 scratch + f32 accumulator temporaries + headroom; clamp to 64 MiB (v7x).
    in_block = TR * SF * 4
    out_block = T2 * C * 4
    scratch_bytes = T1 * F1C * 2
    f32_temp_bytes = T1 * F1C * 4 + 2 * T2 * C * 4 + 3 * T2 * C * 2
    vmem_bytes = (weight_bytes + 2 * in_block + 2 * out_block
                  + scratch_bytes + f32_temp_bytes + (2 << 20))
    vmem_limit = int(min(max(vmem_bytes, 16 << 20), 64 << 20))

    def _wspec(shape):
        # Grid-invariant weights/biases: constant index map, single-buffered.
        return pl.BlockSpec(shape, lambda b: (0,) * len(shape),
                            pipeline_mode=pl.Buffered(1))

    y = pl.pallas_call(
        kern,
        out_shape=jax.ShapeDtypeStruct((B, T2, C), jnp.float32),
        grid_spec=pltpu.PrefetchScalarGridSpec(
            num_scalar_prefetch=0,
            grid=(B,),
            in_specs=[
                pl.BlockSpec((None, TR, SF), lambda b: (b, 0, 0)),   # per-batch block
                _wspec((G * SF, F1C)),
                _wspec((1, F1C)),
                _wspec((9 * C, C)),
                _wspec((1, C)),
                _wspec((F2 * C, C)),
                _wspec((1, C)),
            ],
            out_specs=pl.BlockSpec((None, T2, C), lambda b: (b, 0, 0)),
            scratch_shapes=[
                pltpu.VMEM((T1, F1C), jnp.bfloat16),                 # conv1 activation
            ],
        ),
        compiler_params=pltpu.CompilerParams(
            dimension_semantics=("parallel",),                       # v7x: 2 TCs over B
            vmem_limit_bytes=vmem_limit,
        ),
        cost_estimate=pl.CostEstimate(flops=flops, transcendentals=0,
                                      bytes_accessed=int(bytes_accessed)),
    )(xr, W1, b1f, W2, b2f, WL, blf)

    # Length update: ceil(x_len / tds) clamped to the output time length
    # (exactly what the PyTorch reference does).
    tds = meta["time_downsampling_factor"]
    y_len = jnp.ceil(x_len.astype(jnp.float32) / tds).astype(jnp.int32)
    y_len = jnp.minimum(y_len, T2)
    return y, y_len


# --------------------------- pure-JAX f32 reference ---------------------------
def reference_forward(params, meta, x, x_len):
    ts1, ts2, fs1, fs2 = meta["strides"]
    y = jax.lax.conv_general_dilated(
        x[:, None, :, :], params["w1"], window_strides=(ts1, fs1), padding="VALID",
        dimension_numbers=("NCHW", "OIHW", "NCHW"))
    y = jax.nn.relu(y + params["b1"][None, :, None, None])
    y = jax.lax.conv_general_dilated(
        y, params["w2"], window_strides=(ts2, fs2), padding="VALID",
        dimension_numbers=("NCHW", "OIHW", "NCHW"))
    y = jax.nn.relu(y + params["b2"][None, :, None, None])
    b, c, t, f = y.shape
    y = jnp.transpose(y, (0, 2, 1, 3)).reshape(b, t, c * f)
    y = y @ params["wl"] + params["bl"]
    tds = meta["time_downsampling_factor"]
    y_len = jnp.minimum(
        jnp.ceil(x_len.astype(jnp.float32) / tds).astype(jnp.int32), t)
    return y, y_len


# ---------------------------------- main --------------------------------------
if __name__ == "__main__":
    B, T, input_dim = 2, 16, 16
    output_dim = 32
    time_stride, feature_stride = 2, 2

    key = jax.random.PRNGKey(0)
    kx, kp = jax.random.split(key)
    x = jax.random.normal(kx, (B, T, input_dim), jnp.float32)
    x_len = jnp.array([16, 12], dtype=jnp.int32)

    params, meta = init_speech_embedding_params(
        kp, input_dim, output_dim, time_stride, feature_stride)
    kweights = prepare_kernel_weights(params, meta)

    fwd = jax.jit(functools.partial(speech_embedding_forward, kweights, meta))
    y, y_len = fwd(x, x_len)
    jax.block_until_ready(y)
    jax.block_until_ready(y_len)

    # correctness: compare against the pure-JAX f32 reference (conv2/Linear use
    # bf16 MXU operands with f32 accumulation, so a loose tolerance is expected).
    y_ref, y_len_ref = reference_forward(params, meta, x, x_len)
    ts1, ts2, fs1, fs2 = meta["strides"]
    T2_exp = ((T - 3) // ts1 + 1 - 3) // ts2 + 1
    assert y.shape == (B, T2_exp, output_dim), y.shape
    assert y_len.shape == (B,), y_len.shape
    assert not bool(jnp.any(jnp.isnan(y)))
    assert bool(jnp.all(y_len == y_len_ref)), (y_len, y_len_ref)
    np.testing.assert_allclose(np.asarray(y), np.asarray(y_ref), rtol=5e-2, atol=5e-2)

    print("KERNEL_OK")
</pallas_src>

<mosaic_0001>
module attributes {stable_mosaic.version = 11 : i64} {
  func.func @_speech_embedding_kernel(%arg0: i32, %arg1: memref<1x8x32xf32, #tpu.memory_space<vmem>>, %arg2: memref<64x224xf32, #tpu.memory_space<vmem>>, %arg3: memref<1x224xf32, #tpu.memory_space<vmem>>, %arg4: memref<288x32xbf16, #tpu.memory_space<vmem>>, %arg5: memref<1x32xf32, #tpu.memory_space<vmem>>, %arg6: memref<160x32xbf16, #tpu.memory_space<vmem>>, %arg7: memref<1x32xf32, #tpu.memory_space<vmem>>, %arg8: memref<1x5x32xf32, #tpu.memory_space<vmem>>, %arg9: memref<7x224xbf16, #tpu.memory_space<vmem>>) attributes {dimension_semantics = [#tpu.dimension_semantics<parallel>], iteration_bounds = array<i64: 2>, scalar_prefetch = 0 : i64, scratch_operands = 1 : i64, tpu.core_type = #tpu.core_type<tc>, window_params = [{transform_indices = @transform_0, window_bounds = array<i64: 1, 8, 32>}, {pipeline_mode = #tpu.pipeline_mode<synchronous>, transform_indices = @transform_1, window_bounds = array<i64: 64, 224>}, {pipeline_mode = #tpu.pipeline_mode<synchronous>, transform_indices = @transform_2, window_bounds = array<i64: 1, 224>}, {pipeline_mode = #tpu.pipeline_mode<synchronous>, transform_indices = @transform_3, window_bounds = array<i64: 288, 32>}, {pipeline_mode = #tpu.pipeline_mode<synchronous>, transform_indices = @transform_4, window_bounds = array<i64: 1, 32>}, {pipeline_mode = #tpu.pipeline_mode<synchronous>, transform_indices = @transform_5, window_bounds = array<i64: 160, 32>}, {pipeline_mode = #tpu.pipeline_mode<synchronous>, transform_indices = @transform_6, window_bounds = array<i64: 1, 32>}, {transform_indices = @transform_7, window_bounds = array<i64: 1, 5, 32>}]} {
    %cst = arith.constant 0.000000e+00 : f32
    %0 = vector.broadcast %cst : f32 to vector<7x224xf32>
    %c0 = arith.constant 0 : index
    %c0_0 = arith.constant 0 : index
    %c0_1 = arith.constant 0 : index
    %1 = vector.load %arg1[%c0, %c0_0, %c0_1] : memref<1x8x32xf32, #tpu.memory_space<vmem>>, vector<1x7x32xf32>
    %2 = vector.shape_cast %1 : vector<1x7x32xf32> to vector<7x32xf32>
    %c0_2 = arith.constant 0 : index
    %c0_3 = arith.constant 0 : index
    %3 = vector.load %arg2[%c0_2, %c0_3] : memref<64x224xf32, #tpu.memory_space<vmem>>, vector<32x224xf32>
    %cst_4 = arith.constant dense<0.000000e+00> : vector<7x224xf32>
    %4 = tpu.matmul %2, %3, %cst_4 {dimension_numbers = #tpu.dot_dimension_numbers<[1], [0], [0], [1], [0, 0, 1, 1], [], []>} : vector<7x32xf32>, vector<32x224xf32>, vector<7x224xf32> -> vector<7x224xf32>
    %5 = arith.addf %0, %4 : vector<7x224xf32>
    %c0_5 = arith.constant 0 : index
    %c1 = arith.constant 1 : index
    %c0_6 = arith.constant 0 : index
    %6 = vector.load %arg1[%c0_5, %c1, %c0_6] : memref<1x8x32xf32, #tpu.memory_space<vmem>>, vector<1x7x32xf32>
    %7 = vector.shape_cast %6 : vector<1x7x32xf32> to vector<7x32xf32>
    %c32 = arith.constant 32 : index
    %c0_7 = arith.constant 0 : index
    %8 = vector.load %arg2[%c32, %c0_7] : memref<64x224xf32, #tpu.memory_space<vmem>>, vector<32x224xf32>
    %cst_8 = arith.constant dense<0.000000e+00> : vector<7x224xf32>
    %9 = tpu.matmul %7, %8, %cst_8 {dimension_numbers = #tpu.dot_dimension_numbers<[1], [0], [0], [1], [0, 0, 1, 1], [], []>} : vector<7x32xf32>, vector<32x224xf32>, vector<7x224xf32> -> vector<7x224xf32>
    %10 = arith.addf %5, %9 : vector<7x224xf32>
    %c0_9 = arith.constant 0 : index
    %c0_10 = arith.constant 0 : index
    %11 = vector.load %arg3[%c0_9, %c0_10] : memref<1x224xf32, #tpu.memory_space<vmem>>, vector<1x224xf32>
    %12 = vector.broadcast %11 : vector<1x224xf32> to vector<7x224xf32>
    %13 = arith.addf %10, %12 : vector<7x224xf32>
    %cst_11 = arith.constant 0.000000e+00 : f32
    %14 = vector.broadcast %cst_11 : f32 to vector<7x224xf32>
    %15 = arith.maximumf %13, %14 : vector<7x224xf32>
    %16 = arith.truncf %15 : vector<7x224xf32> to vector<7x224xbf16>
    %c0_12 = arith.constant 0 : index
    %c0_13 = arith.constant 0 : index
    %17 = vector.load %arg9[%c0_12, %c0_13] : memref<7x224xbf16, #tpu.memory_space<vmem>>, vector<7x224xbf16>
    tpu.vector_store %arg9[%c0_12, %c0_13], %16 {strides = array<i32>} : memref<7x224xbf16, #tpu.memory_space<vmem>>, vector<7x224xbf16>,
    %cst_14 = arith.constant 0.000000e+00 : f32
    %18 = vector.broadcast %cst_14 : f32 to vector<5x32xf32>
    %c0_15 = arith.constant 0 : index
    %c0_16 = arith.constant 0 : index
    %19 = vector.load %arg7[%c0_15, %c0_16] : memref<1x32xf32, #tpu.memory_space<vmem>>, vector<1x32xf32>
    %20 = vector.broadcast %19 : vector<1x32xf32> to vector<5x32xf32>
    %21 = arith.addf %18, %20 : vector<5x32xf32>
    %cst_17 = arith.constant 0.000000e+00 : f32
    %22 = vector.broadcast %cst_17 : f32 to vector<5x32xf32>
    %c0_18 = arith.constant 0 : index
    %c0_19 = arith.constant 0 : index
    %23 = vector.load %arg4[%c0_18, %c0_19] : memref<288x32xbf16, #tpu.memory_space<vmem>>, vector<32x32xbf16>
    %c0_20 = arith.constant 0 : index
    %c0_21 = arith.constant 0 : index
    %24 = vector.load %arg9[%c0_20, %c0_21] : memref<7x224xbf16, #tpu.memory_space<vmem>>, vector<5x32xbf16>
    %cst_22 = arith.constant dense<0.000000e+00> : vector<5x32xf32>
    %25 = tpu.matmul %24, %23, %cst_22 {dimension_numbers = #tpu.dot_dimension_numbers<[1], [0], [0], [1], [0, 0, 1, 1], [], []>} : vector<5x32xbf16>, vector<32x32xbf16>, vector<5x32xf32> -> vector<5x32xf32>
    %26 = arith.addf %22, %25 : vector<5x32xf32>
    %c32_23 = arith.constant 32 : index
    %c0_24 = arith.constant 0 : index
    %27 = vector.load %arg4[%c32_23, %c0_24] : memref<288x32xbf16, #tpu.memory_space<vmem>>, vector<32x32xbf16>
    %c0_25 = arith.constant 0 : index
    %c32_26 = arith.constant 32 : index
    %28 = vector.load %arg9[%c0_25, %c32_26] : memref<7x224xbf16, #tpu.memory_space<vmem>>, vector<5x32xbf16>
    %cst_27 = arith.constant dense<0.000000e+00> : vector<5x32xf32>
    %29 = tpu.matmul %28, %27, %cst_27 {dimension_numbers = #tpu.dot_dimension_numbers<[1], [0], [0], [1], [0, 0, 1, 1], [], []>} : vector<5x32xbf16>, vector<32x32xbf16>, vector<5x32xf32> -> vector<5x32xf32>
    %30 = arith.addf %26, %29 : vector<5x32xf32>
    %c64 = arith.constant 64 : index
    %c0_28 = arith.constant 0 : index
    %31 = vector.load %arg4[%c64, %c0_28] : memref<288x32xbf16, #tpu.memory_space<vmem>>, vector<32x32xbf16>
    %c0_29 = arith.constant 0 : index
    %c64_30 = arith.constant 64 : index
    %32 = vector.load %arg9[%c0_29, %c64_30] : memref<7x224xbf16, #tpu.memory_space<vmem>>, vector<5x32xbf16>
    %cst_31 = arith.constant dense<0.000000e+00> : vector<5x32xf32>
    %33 = tpu.matmul %32, %31, %cst_31 {dimension_numbers = #tpu.dot_dimension_numbers<[1], [0], [0], [1], [0, 0, 1, 1], [], []>} : vector<5x32xbf16>, vector<32x32xbf16>, vector<5x32xf32> -> vector<5x32xf32>
    %34 = arith.addf %30, %33 : vector<5x32xf32>
    %c96 = arith.constant 96 : index
    %c0_32 = arith.constant 0 : index
    %35 = vector.load %arg4[%c96, %c0_32] : memref<288x32xbf16, #tpu.memory_space<vmem>>, vector<32x32xbf16>
    %c1_33 = arith.constant 1 : index
    %c0_34 = arith.constant 0 : index
    %36 = vector.load %arg9[%c1_33, %c0_34] : memref<7x224xbf16, #tpu.memory_space<vmem>>, vector<5x32xbf16>
    %cst_35 = arith.constant dense<0.000000e+00> : vector<5x32xf32>
    %37 = tpu.matmul %36, %35, %cst_35 {dimension_numbers = #tpu.dot_dimension_numbers<[1], [0], [0], [1], [0, 0, 1, 1], [], []>} : vector<5x32xbf16>, vector<32x32xbf16>, vector<5x32xf32> -> vector<5x32xf32>
    %38 = arith.addf %34, %37 : vector<5x32xf32>
    %c128 = arith.constant 128 : index
    %c0_36 = arith.constant 0 : index
    %39 = vector.load %arg4[%c128, %c0_36] : memref<288x32xbf16, #tpu.memory_space<vmem>>, vector<32x32xbf16>
    %c1_37 = arith.constant 1 : index
    %c32_38 = arith.constant 32 : index
    %40 = vector.load %arg9[%c1_37, %c32_38] : memref<7x224xbf16, #tpu.memory_space<vmem>>, vector<5x32xbf16>
    %cst_39 = arith.constant dense<0.000000e+00> : vector<5x32xf32>
    %41 = tpu.matmul %40, %39, %cst_39 {dimension_numbers = #tpu.dot_dimension_numbers<[1], [0], [0], [1], [0, 0, 1, 1], [], []>} : vector<5x32xbf16>, vector<32x32xbf16>, vector<5x32xf32> -> vector<5x32xf32>
    %42 = arith.addf %38, %41 : vector<5x32xf32>
    %c160 = arith.constant 160 : index
    %c0_40 = arith.constant 0 : index
    %43 = vector.load %arg4[%c160, %c0_40] : memref<288x32xbf16, #tpu.memory_space<vmem>>, vector<32x32xbf16>
    %c1_41 = arith.constant 1 : index
    %c64_42 = arith.constant 64 : index
    %44 = vector.load %arg9[%c1_41, %c64_42] : memref<7x224xbf16, #tpu.memory_space<vmem>>, vector<5x32xbf16>
    %cst_43 = arith.constant dense<0.000000e+00> : vector<5x32xf32>
    %45 = tpu.matmul %44, %43, %cst_43 {dimension_numbers = #tpu.dot_dimension_numbers<[1], [0], [0], [1], [0, 0, 1, 1], [], []>} : vector<5x32xbf16>, vector<32x32xbf16>, vector<5x32xf32> -> vector<5x32xf32>
    %46 = arith.addf %42, %45 : vector<5x32xf32>
    %c192 = arith.constant 192 : index
    %c0_44 = arith.constant 0 : index
    %47 = vector.load %arg4[%c192, %c0_44] : memref<288x32xbf16, #tpu.memory_space<vmem>>, vector<32x32xbf16>
    %c2 = arith.constant 2 : index
    %c0_45 = arith.constant 0 : index
    %48 = vector.load %arg9[%c2, %c0_45] : memref<7x224xbf16, #tpu.memory_space<vmem>>, vector<5x32xbf16>
    %cst_46 = arith.constant dense<0.000000e+00> : vector<5x32xf32>
    %49 = tpu.matmul %48, %47, %cst_46 {dimension_numbers = #tpu.dot_dimension_numbers<[1], [0], [0], [1], [0, 0, 1, 1], [], []>} : vector<5x32xbf16>, vector<32x32xbf16>, vector<5x32xf32> -> vector<5x32xf32>
    %50 = arith.addf %46, %49 : vector<5x32xf32>
    %c224 = arith.constant 224 : index
    %c0_47 = arith.constant 0 : index
    %51 = vector.load %arg4[%c224, %c0_47] : memref<288x32xbf16, #tpu.memory_space<vmem>>, vector<32x32xbf16>
    %c2_48 = arith.constant 2 : index
    %c32_49 = arith.constant 32 : index
    %52 = vector.load %arg9[%c2_48, %c32_49] : memref<7x224xbf16, #tpu.memory_space<vmem>>, vector<5x32xbf16>
    %cst_50 = arith.constant dense<0.000000e+00> : vector<5x32xf32>
    %53 = tpu.matmul %52, %51, %cst_50 {dimension_numbers = #tpu.dot_dimension_numbers<[1], [0], [0], [1], [0, 0, 1, 1], [], []>} : vector<5x32xbf16>, vector<32x32xbf16>, vector<5x32xf32> -> vector<5x32xf32>
    %54 = arith.addf %50, %53 : vector<5x32xf32>
    %c256 = arith.constant 256 : index
    %c0_51 = arith.constant 0 : index
    %55 = vector.load %arg4[%c256, %c0_51] : memref<288x32xbf16, #tpu.memory_space<vmem>>, vector<32x32xbf16>
    %c2_52 = arith.constant 2 : index
    %c64_53 = arith.constant 64 : index
    %56 = vector.load %arg9[%c2_52, %c64_53] : memref<7x224xbf16, #tpu.memory_space<vmem>>, vector<5x32xbf16>
    %cst_54 = arith.constant dense<0.000000e+00> : vector<5x32xf32>
    %57 = tpu.matmul %56, %55, %cst_54 {dimension_numbers = #tpu.dot_dimension_numbers<[1], [0], [0], [1], [0, 0, 1, 1], [], []>} : vector<5x32xbf16>, vector<32x32xbf16>, vector<5x32xf32> -> vector<5x32xf32>
    %58 = arith.addf %54, %57 : vector<5x32xf32>
    %c0_55 = arith.constant 0 : index
    %c0_56 = arith.constant 0 : index
    %59 = vector.load %arg5[%c0_55, %c0_56] : memref<1x32xf32, #tpu.memory_space<vmem>>, vector<1x32xf32>
    %60 = vector.broadcast %59 : vector<1x32xf32> to vector<5x32xf32>
    %61 = arith.addf %58, %60 : vector<5x32xf32>
    %cst_57 = arith.constant 0.000000e+00 : f32
    %62 = vector.broadcast %cst_57 : f32 to vector<5x32xf32>
    %63 = arith.maximumf %61, %62 : vector<5x32xf32>
    %64 = arith.truncf %63 : vector<5x32xf32> to vector<5x32xbf16>
    %c0_58 = arith.constant 0 : index
    %c0_59 = arith.constant 0 : index
    %65 = vector.load %arg6[%c0_58, %c0_59] : memref<160x32xbf16, #tpu.memory_space<vmem>>, vector<32x32xbf16>
    %cst_60 = arith.constant dense<0.000000e+00> : vector<5x32xf32>
    %66 = tpu.matmul %64, %65, %cst_60 {dimension_numbers = #tpu.dot_dimension_numbers<[1], [0], [0], [1], [0, 0, 1, 1], [], []>} : vector<5x32xbf16>, vector<32x32xbf16>, vector<5x32xf32> -> vector<5x32xf32>
    %67 = arith.addf %21, %66 : vector<5x32xf32>
    %cst_61 = arith.constant 0.000000e+00 : f32
    %68 = vector.broadcast %cst_61 : f32 to vector<5x32xf32>
    %c0_62 = arith.constant 0 : index
    %c0_63 = arith.constant 0 : index
    %69 = vector.load %arg4[%c0_62, %c0_63] : memref<288x32xbf16, #tpu.memory_space<vmem>>, vector<32x32xbf16>
    %c0_64 = arith.constant 0 : index
    %c32_65 = arith.constant 32 : index
    %70 = vector.load %arg9[%c0_64, %c32_65] : memref<7x224xbf16, #tpu.memory_space<vmem>>, vector<5x32xbf16>
    %cst_66 = arith.constant dense<0.000000e+00> : vector<5x32xf32>
    %71 = tpu.matmul %70, %69, %cst_66 {dimension_numbers = #tpu.dot_dimension_numbers<[1], [0], [0], [1], [0, 0, 1, 1], [], []>} : vector<5x32xbf16>, vector<32x32xbf16>, vector<5x32xf32> -> vector<5x32xf32>
    %72 = arith.addf %68, %71 : vector<5x32xf32>
    %c32_67 = arith.constant 32 : index
    %c0_68 = arith.constant 0 : index
    %73 = vector.load %arg4[%c32_67, %c0_68] : memref<288x32xbf16, #tpu.memory_space<vmem>>, vector<32x32xbf16>
    %c0_69 = arith.constant 0 : index
    %c64_70 = arith.constant 64 : index
    %74 = vector.load %arg9[%c0_69, %c64_70] : memref<7x224xbf16, #tpu.memory_space<vmem>>, vector<5x32xbf16>
    %cst_71 = arith.constant dense<0.000000e+00> : vector<5x32xf32>
    %75 = tpu.matmul %74, %73, %cst_71 {dimension_numbers = #tpu.dot_dimension_numbers<[1], [0], [0], [1], [0, 0, 1, 1], [], []>} : vector<5x32xbf16>, vector<32x32xbf16>, vector<5x32xf32> -> vector<5x32xf32>
    %76 = arith.addf %72, %75 : vector<5x32xf32>
    %c64_72 = arith.constant 64 : index
    %c0_73 = arith.constant 0 : index
    %77 = vector.load %arg4[%c64_72, %c0_73] : memref<288x32xbf16, #tpu.memory_space<vmem>>, vector<32x32xbf16>
    %c0_74 = arith.constant 0 : index
    %c96_75 = arith.constant 96 : index
    %78 = vector.load %arg9[%c0_74, %c96_75] : memref<7x224xbf16, #tpu.memory_space<vmem>>, vector<5x32xbf16>
    %cst_76 = arith.constant dense<0.000000e+00> : vector<5x32xf32>
    %79 = tpu.matmul %78, %77, %cst_76 {dimension_numbers = #tpu.dot_dimension_numbers<[1], [0], [0], [1], [0, 0, 1, 1], [], []>} : vector<5x32xbf16>, vector<32x32xbf16>, vector<5x32xf32> -> vector<5x32xf32>
    %80 = arith.addf %76, %79 : vector<5x32xf32>
    %c96_77 = arith.constant 96 : index
    %c0_78 = arith.constant 0 : index
    %81 = vector.load %arg4[%c96_77, %c0_78] : memref<288x32xbf16, #tpu.memory_space<vmem>>, vector<32x32xbf16>
    %c1_79 = arith.constant 1 : index
    %c32_80 = arith.constant 32 : index
    %82 = vector.load %arg9[%c1_79, %c32_80] : memref<7x224xbf16, #tpu.memory_space<vmem>>, vector<5x32xbf16>
    %cst_81 = arith.constant dense<0.000000e+00> : vector<5x32xf32>
    %83 = tpu.matmul %82, %81, %cst_81 {dimension_numbers = #tpu.dot_dimension_numbers<[1], [0], [0], [1], [0, 0, 1, 1], [], []>} : vector<5x32xbf16>, vector<32x32xbf16>, vector<5x32xf32> -> vector<5x32xf32>
    %84 = arith.addf %80, %83 : vector<5x32xf32>
    %c128_82 = arith.constant 128 : index
    %c0_83 = arith.constant 0 : index
    %85 = vector.load %arg4[%c128_82, %c0_83] : memref<288x32xbf16, #tpu.memory_space<vmem>>, vector<32x32xbf16>
    %c1_84 = arith.constant 1 : index
    %c64_85 = arith.constant 64 : index
    %86 = vector.load %arg9[%c1_84, %c64_85] : memref<7x224xbf16, #tpu.memory_space<vmem>>, vector<5x32xbf16>
    %cst_86 = arith.constant dense<0.000000e+00> : vector<5x32xf32>
    %87 = tpu.matmul %86, %85, %cst_86 {dimension_numbers = #tpu.dot_dimension_numbers<[1], [0], [0], [1], [0, 0, 1, 1], [], []>} : vector<5x32xbf16>, vector<32x32xbf16>, vector<5x32xf32> -> vector<5x32xf32>
    %88 = arith.addf %84, %87 : vector<5x32xf32>
    %c160_87 = arith.constant 160 : index
    %c0_88 = arith.constant 0 : index
    %89 = vector.load %arg4[%c160_87, %c0_88] : memref<288x32xbf16, #tpu.memory_space<vmem>>, vector<32x32xbf16>
    %c1_89 = arith.constant 1 : index
    %c96_90 = arith.constant 96 : index
    %90 = vector.load %arg9[%c1_89, %c96_90] : memref<7x224xbf16, #tpu.memory_space<vmem>>, vector<5x32xbf16>
    %cst_91 = arith.constant dense<0.000000e+00> : vector<5x32xf32>
    %91 = tpu.matmul %90, %89, %cst_91 {dimension_numbers = #tpu.dot_dimension_numbers<[1], [0], [0], [1], [0, 0, 1, 1], [], []>} : vector<5x32xbf16>, vector<32x32xbf16>, vector<5x32xf32> -> vector<5x32xf32>
    %92 = arith.addf %88, %91 : vector<5x32xf32>
    %c192_92 = arith.constant 192 : index
    %c0_93 = arith.constant 0 : index
    %93 = vector.load %arg4[%c192_92, %c0_93] : memref<288x32xbf16, #tpu.memory_space<vmem>>, vector<32x32xbf16>
    %c2_94 = arith.constant 2 : index
    %c32_95 = arith.constant 32 : index
    %94 = vector.load %arg9[%c2_94, %c32_95] : memref<7x224xbf16, #tpu.memory_space<vmem>>, vector<5x32xbf16>
    %cst_96 = arith.constant dense<0.000000e+00> : vector<5x32xf32>
    %95 = tpu.matmul %94, %93, %cst_96 {dimension_numbers = #tpu.dot_dimension_numbers<[1], [0], [0], [1], [0, 0, 1, 1], [], []>} : vector<5x32xbf16>, vector<32x32xbf16>, vector<5x32xf32> -> vector<5x32xf32>
    %96 = arith.addf %92, %95 : vector<5x32xf32>
    %c224_97 = arith.constant 224 : index
    %c0_98 = arith.constant 0 : index
    %97 = vector.load %arg4[%c224_97, %c0_98] : memref<288x32xbf16, #tpu.memory_space<vmem>>, vector<32x32xbf16>
    %c2_99 = arith.constant 2 : index
    %c64_100 = arith.constant 64 : index
    %98 = vector.load %arg9[%c2_99, %c64_100] : memref<7x224xbf16, #tpu.memory_space<vmem>>, vector<5x32xbf16>
    %cst_101 = arith.constant dense<0.000000e+00> : vector<5x32xf32>
    %99 = tpu.matmul %98, %97, %cst_101 {dimension_numbers = #tpu.dot_dimension_numbers<[1], [0], [0], [1], [0, 0, 1, 1], [], []>} : vector<5x32xbf16>, vector<32x32xbf16>, vector<5x32xf32> -> vector<5x32xf32>
    %100 = arith.addf %96, %99 : vector<5x32xf32>
    %c256_102 = arith.constant 256 : index
    %c0_103 = arith.constant 0 : index
    %101 = vector.load %arg4[%c256_102, %c0_103] : memref<288x32xbf16, #tpu.memory_space<vmem>>, vector<32x32xbf16>
    %c2_104 = arith.constant 2 : index
    %c96_105 = arith.constant 96 : index
    %102 = vector.load %arg9[%c2_104, %c96_105] : memref<7x224xbf16, #tpu.memory_space<vmem>>, vector<5x32xbf16>
    %cst_106 = arith.constant dense<0.000000e+00> : vector<5x32xf32>
    %103 = tpu.matmul %102, %101, %cst_106 {dimension_numbers = #tpu.dot_dimension_numbers<[1], [0], [0], [1], [0, 0, 1, 1], [], []>} : vector<5x32xbf16>, vector<32x32xbf16>, vector<5x32xf32> -> vector<5x32xf32>
    %104 = arith.addf %100, %103 : vector<5x32xf32>
    %c0_107 = arith.constant 0 : index
    %c0_108 = arith.constant 0 : index
    %105 = vector.load %arg5[%c0_107, %c0_108] : memref<1x32xf32, #tpu.memory_space<vmem>>, vector<1x32xf32>
    %106 = vector.broadcast %105 : vector<1x32xf32> to vector<5x32xf32>
    %107 = arith.addf %104, %106 : vector<5x32xf32>
    %cst_109 = arith.constant 0.000000e+00 : f32
    %108 = vector.broadcast %cst_109 : f32 to vector<5x32xf32>
    %109 = arith.maximumf %107, %108 : vector<5x32xf32>
    %110 = arith.truncf %109 : vector<5x32xf32> to vector<5x32xbf16>
    %c32_110 = arith.constant 32 : index
    %c0_111 = arith.constant 0 : index
    %111 = vector.load %arg6[%c32_110, %c0_111] : memref<160x32xbf16, #tpu.memory_space<vmem>>, vector<32x32xbf16>
    %cst_112 = arith.constant dense<0.000000e+00> : vector<5x32xf32>
    %112 = tpu.matmul %110, %111, %cst_112 {dimension_numbers = #tpu.dot_dimension_numbers<[1], [0], [0], [1], [0, 0, 1, 1], [], []>} : vector<5x32xbf16>, vector<32x32xbf16>, vector<5x32xf32> -> vector<5x32xf32>
    %113 = arith.addf %67, %112 : vector<5x32xf32>
    %cst_113 = arith.constant 0.000000e+00 : f32
    %114 = vector.broadcast %cst_113 : f32 to vector<5x32xf32>
    %c0_114 = arith.constant 0 : index
    %c0_115 = arith.constant 0 : index
    %115 = vector.load %arg4[%c0_114, %c0_115] : memref<288x32xbf16, #tpu.memory_space<vmem>>, vector<32x32xbf16>
    %c0_116 = arith.constant 0 : index
    %c64_117 = arith.constant 64 : index
    %116 = vector.load %arg9[%c0_116, %c64_117] : memref<7x224xbf16, #tpu.memory_space<vmem>>, vector<5x32xbf16>
    %cst_118 = arith.constant dense<0.000000e+00> : vector<5x32xf32>
    %117 = tpu.matmul %116, %115, %cst_118 {dimension_numbers = #tpu.dot_dimension_numbers<[1], [0], [0], [1], [0, 0, 1, 1], [], []>} : vector<5x32xbf16>, vector<32x32xbf16>, vector<5x32xf32> -> vector<5x32xf32>
    %118 = arith.addf %114, %117 : vector<5x32xf32>
    %c32_119 = arith.constant 32 : index
    %c0_120 = arith.constant 0 : index
    %119 = vector.load %arg4[%c32_119, %c0_120] : memref<288x32xbf16, #tpu.memory_space<vmem>>, vector<32x32xbf16>
    %c0_121 = arith.constant 0 : index
    %c96_122 = arith.constant 96 : index
    %120 = vector.load %arg9[%c0_121, %c96_122] : memref<7x224xbf16, #tpu.memory_space<vmem>>, vector<5x32xbf16>
    %cst_123 = arith.constant dense<0.000000e+00> : vector<5x32xf32>
    %121 = tpu.matmul %120, %119, %cst_123 {dimension_numbers = #tpu.dot_dimension_numbers<[1], [0], [0], [1], [0, 0, 1, 1], [], []>} : vector<5x32xbf16>, vector<32x32xbf16>, vector<5x32xf32> -> vector<5x32xf32>
    %122 = arith.addf %118, %121 : vector<5x32xf32>
    %c64_124 = arith.constant 64 : index
    %c0_125 = arith.constant 0 : index
    %123 = vector.load %arg4[%c64_124, %c0_125] : memref<288x32xbf16, #tpu.memory_space<vmem>>, vector<32x32xbf16>
    %c0_126 = arith.constant 0 : index
    %c128_127 = arith.constant 128 : index
    %124 = vector.load %arg9[%c0_126, %c128_127] : memref<7x224xbf16, #tpu.memory_space<vmem>>, vector<5x32xbf16>
    %cst_128 = arith.constant dense<0.000000e+00> : vector<5x32xf32>
    %125 = tpu.matmul %124, %123, %cst_128 {dimension_numbers = #tpu.dot_dimension_numbers<[1], [0], [0], [1], [0, 0, 1, 1], [], []>} : vector<5x32xbf16>, vector<32x32xbf16>, vector<5x32xf32> -> vector<5x32xf32>
    %126 = arith.addf %122, %125 : vector<5x32xf32>
    %c96_129 = arith.constant 96 : index
    %c0_130 = arith.constant 0 : index
    %127 = vector.load %arg4[%c96_129, %c0_130] : memref<288x32xbf16, #tpu.memory_space<vmem>>, vector<32x32xbf16>
    %c1_131 = arith.constant 1 : index
    %c64_132 = arith.constant 64 : index
    %128 = vector.load %arg9[%c1_131, %c64_132] : memref<7x224xbf16, #tpu.memory_space<vmem>>, vector<5x32xbf16>
    %cst_133 = arith.constant dense<0.000000e+00> : vector<5x32xf32>
    %129 = tpu.matmul %128, %127, %cst_133 {dimension_numbers = #tpu.dot_dimension_numbers<[1], [0], [0], [1], [0, 0, 1, 1], [], []>} : vector<5x32xbf16>, vector<32x32xbf16>, vector<5x32xf32> -> vector<5x32xf32>
    %130 = arith.addf %126, %129 : vector<5x32xf32>
    %c128_134 = arith.constant 128 : index
    %c0_135 = arith.constant 0 : index
    %131 = vector.load %arg4[%c128_134, %c0_135] : memref<288x32xbf16, #tpu.memory_space<vmem>>, vector<32x32xbf16>
    %c1_136 = arith.constant 1 : index
    %c96_137 = arith.constant 96 : index
    %132 = vector.load %arg9[%c1_136, %c96_137] : memref<7x224xbf16, #tpu.memory_space<vmem>>, vector<5x32xbf16>
    %cst_138 = arith.constant dense<0.000000e+00> : vector<5x32xf32>
    %133 = tpu.matmul %132, %131, %cst_138 {dimension_numbers = #tpu.dot_dimension_numbers<[1], [0], [0], [1], [0, 0, 1, 1], [], []>} : vector<5x32xbf16>, vector<32x32xbf16>, vector<5x32xf32> -> vector<5x32xf32>
    %134 = arith.addf %130, %133 : vector<5x32xf32>
    %c160_139 = arith.constant 160 : index
    %c0_140 = arith.constant 0 : index
    %135 = vector.load %arg4[%c160_139, %c0_140] : memref<288x32xbf16, #tpu.memory_space<vmem>>, vector<32x32xbf16>
    %c1_141 = arith.constant 1 : index
    %c128_142 = arith.constant 128 : index
    %136 = vector.load %arg9[%c1_141, %c128_142] : memref<7x224xbf16, #tpu.memory_space<vmem>>, vector<5x32xbf16>
    %cst_143 = arith.constant dense<0.000000e+00> : vector<5x32xf32>
    %137 = tpu.matmul %136, %135, %cst_143 {dimension_numbers = #tpu.dot_dimension_numbers<[1], [0], [0], [1], [0, 0, 1, 1], [], []>} : vector<5x32xbf16>, vector<32x32xbf16>, vector<5x32xf32> -> vector<5x32xf32>
    %138 = arith.addf %134, %137 : vector<5x32xf32>
    %c192_144 = arith.constant 192 : index
    %c0_145 = arith.constant 0 : index
    %139 = vector.load %arg4[%c192_144, %c0_145] : memref<288x32xbf16, #tpu.memory_space<vmem>>, vector<32x32xbf16>
    %c2_146 = arith.constant 2 : index
    %c64_147 = arith.constant 64 : index
    %140 = vector.load %arg9[%c2_146, %c64_147] : memref<7x224xbf16, #tpu.memory_space<vmem>>, vector<5x32xbf16>
    %cst_148 = arith.constant dense<0.000000e+00> : vector<5x32xf32>
    %141 = tpu.matmul %140, %139, %cst_148 {dimension_numbers = #tpu.dot_dimension_numbers<[1], [0], [0], [1], [0, 0, 1, 1], [], []>} : vector<5x32xbf16>, vector<32x32xbf16>, vector<5x32xf32> -> vector<5x32xf32>
    %142 = arith.addf %138, %141 : vector<5x32xf32>
    %c224_149 = arith.constant 224 : index
    %c0_150 = arith.constant 0 : index
    %143 = vector.load %arg4[%c224_149, %c0_150] : memref<288x32xbf16, #tpu.memory_space<vmem>>, vector<32x32xbf16>
    %c2_151 = arith.constant 2 : index
    %c96_152 = arith.constant 96 : index
    %144 = vector.load %arg9[%c2_151, %c96_152] : memref<7x224xbf16, #tpu.memory_space<vmem>>, vector<5x32xbf16>
    %cst_153 = arith.constant dense<0.000000e+00> : vector<5x32xf32>
    %145 = tpu.matmul %144, %143, %cst_153 {dimension_numbers = #tpu.dot_dimension_numbers<[1], [0], [0], [1], [0, 0, 1, 1], [], []>} : vector<5x32xbf16>, vector<32x32xbf16>, vector<5x32xf32> -> vector<5x32xf32>
    %146 = arith.addf %142, %145 : vector<5x32xf32>
    %c256_154 = arith.constant 256 : index
    %c0_155 = arith.constant 0 : index
    %147 = vector.load %arg4[%c256_154, %c0_155] : memref<288x32xbf16, #tpu.memory_space<vmem>>, vector<32x32xbf16>
    %c2_156 = arith.constant 2 : index
    %c128_157 = arith.constant 128 : index
    %148 = vector.load %arg9[%c2_156, %c128_157] : memref<7x224xbf16, #tpu.memory_space<vmem>>, vector<5x32xbf16>
    %cst_158 = arith.constant dense<0.000000e+00> : vector<5x32xf32>
    %149 = tpu.matmul %148, %147, %cst_158 {dimension_numbers = #tpu.dot_dimension_numbers<[1], [0], [0], [1], [0, 0, 1, 1], [], []>} : vector<5x32xbf16>, vector<32x32xbf16>, vector<5x32xf32> -> vector<5x32xf32>
    %150 = arith.addf %146, %149 : vector<5x32xf32>
    %c0_159 = arith.constant 0 : index
    %c0_160 = arith.constant 0 : index
    %151 = vector.load %arg5[%c0_159, %c0_160] : memref<1x32xf32, #tpu.memory_space<vmem>>, vector<1x32xf32>
    %152 = vector.broadcast %151 : vector<1x32xf32> to vector<5x32xf32>
    %153 = arith.addf %150, %152 : vector<5x32xf32>
    %cst_161 = arith.constant 0.000000e+00 : f32
    %154 = vector.broadcast %cst_161 : f32 to vector<5x32xf32>
    %155 = arith.maximumf %153, %154 : vector<5x32xf32>
    %156 = arith.truncf %155 : vector<5x32xf32> to vector<5x32xbf16>
    %c64_162 = arith.constant 64 : index
    %c0_163 = arith.constant 0 : index
    %157 = vector.load %arg6[%c64_162, %c0_163] : memref<160x32xbf16, #tpu.memory_space<vmem>>, vector<32x32xbf16>
    %cst_164 = arith.constant dense<0.000000e+00> : vector<5x32xf32>
    %158 = tpu.matmul %156, %157, %cst_164 {dimension_numbers = #tpu.dot_dimension_numbers<[1], [0], [0], [1], [0, 0, 1, 1], [], []>} : vector<5x32xbf16>, vector<32x32xbf16>, vector<5x32xf32> -> vector<5x32xf32>
    %159 = arith.addf %113, %158 : vector<5x32xf32>
    %cst_165 = arith.constant 0.000000e+00 : f32
    %160 = vector.broadcast %cst_165 : f32 to vector<5x32xf32>
    %c0_166 = arith.constant 0 : index
    %c0_167 = arith.constant 0 : index
    %161 = vector.load %arg4[%c0_166, %c0_167] : memref<288x32xbf16, #tpu.memory_space<vmem>>, vector<32x32xbf16>
    %c0_168 = arith.constant 0 : index
    %c96_169 = arith.constant 96 : index
    %162 = vector.load %arg9[%c0_168, %c96_169] : memref<7x224xbf16, #tpu.memory_space<vmem>>, vector<5x32xbf16>
    %cst_170 = arith.constant dense<0.000000e+00> : vector<5x32xf32>
    %163 = tpu.matmul %162, %161, %cst_170 {dimension_numbers = #tpu.dot_dimension_numbers<[1], [0], [0], [1], [0, 0, 1, 1], [], []>} : vector<5x32xbf16>, vector<32x32xbf16>, vector<5x32xf32> -> vector<5x32xf32>
    %164 = arith.addf %160, %163 : vector<5x32xf32>
    %c32_171 = arith.constant 32 : index
    %c0_172 = arith.constant 0 : index
    %165 = vector.load %arg4[%c32_171, %c0_172] : memref<288x32xbf16, #tpu.memory_space<vmem>>, vector<32x32xbf16>
    %c0_173 = arith.constant 0 : index
    %c128_174 = arith.constant 128 : index
    %166 = vector.load %arg9[%c0_173, %c128_174] : memref<7x224xbf16, #tpu.memory_space<vmem>>, vector<5x32xbf16>
    %cst_175 = arith.constant dense<0.000000e+00> : vector<5x32xf32>
    %167 = tpu.matmul %166, %165, %cst_175 {dimension_numbers = #tpu.dot_dimension_numbers<[1], [0], [0], [1], [0, 0, 1, 1], [], []>} : vector<5x32xbf16>, vector<32x32xbf16>, vector<5x32xf32> -> vector<5x32xf32>
    %168 = arith.addf %164, %167 : vector<5x32xf32>
    %c64_176 = arith.constant 64 : index
    %c0_177 = arith.constant 0 : index
    %169 = vector.load %arg4[%c64_176, %c0_177] : memref<288x32xbf16, #tpu.memory_space<vmem>>, vector<32x32xbf16>
    %c0_178 = arith.constant 0 : index
    %c160_179 = arith.constant 160 : index
    %170 = vector.load %arg9[%c0_178, %c160_179] : memref<7x224xbf16, #tpu.memory_space<vmem>>, vector<5x32xbf16>
    %cst_180 = arith.constant dense<0.000000e+00> : vector<5x32xf32>
    %171 = tpu.matmul %170, %169, %cst_180 {dimension_numbers = #tpu.dot_dimension_numbers<[1], [0], [0], [1], [0, 0, 1, 1], [], []>} : vector<5x32xbf16>, vector<32x32xbf16>, vector<5x32xf32> -> vector<5x32xf32>
    %172 = arith.addf %168, %171 : vector<5x32xf32>
    %c96_181 = arith.constant 96 : index
    %c0_182 = arith.constant 0 : index
    %173 = vector.load %arg4[%c96_181, %c0_182] : memref<288x32xbf16, #tpu.memory_space<vmem>>, vector<32x32xbf16>
    %c1_183 = arith.constant 1 : index
    %c96_184 = arith.constant 96 : index
    %174 = vector.load %arg9[%c1_183, %c96_184] : memref<7x224xbf16, #tpu.memory_space<vmem>>, vector<5x32xbf16>
    %cst_185 = arith.constant dense<0.000000e+00> : vector<5x32xf32>
    %175 = tpu.matmul %174, %173, %cst_185 {dimension_numbers = #tpu.dot_dimension_numbers<[1], [0], [0], [1], [0, 0, 1, 1], [], []>} : vector<5x32xbf16>, vector<32x32xbf16>, vector<5x32xf32> -> vector<5x32xf32>
    %176 = arith.addf %172, %175 : vector<5x32xf32>
    %c128_186 = arith.constant 128 : index
    %c0_187 = arith.constant 0 : index
    %177 = vector.load %arg4[%c128_186, %c0_187] : memref<288x32xbf16, #tpu.memory_space<vmem>>, vector<32x32xbf16>
    %c1_188 = arith.constant 1 : index
    %c128_189 = arith.constant 128 : index
    %178 = vector.load %arg9[%c1_188, %c128_189] : memref<7x224xbf16, #tpu.memory_space<vmem>>, vector<5x32xbf16>
    %cst_190 = arith.constant dense<0.000000e+00> : vector<5x32xf32>
    %179 = tpu.matmul %178, %177, %cst_190 {dimension_numbers = #tpu.dot_dimension_numbers<[1], [0], [0], [1], [0, 0, 1, 1], [], []>} : vector<5x32xbf16>, vector<32x32xbf16>, vector<5x32xf32> -> vector<5x32xf32>
    %180 = arith.addf %176, %179 : vector<5x32xf32>
    %c160_191 = arith.constant 160 : index
    %c0_192 = arith.constant 0 : index
    %181 = vector.load %arg4[%c160_191, %c0_192] : memref<288x32xbf16, #tpu.memory_space<vmem>>, vector<32x32xbf16>
    %c1_193 = arith.constant 1 : index
    %c160_194 = arith.constant 160 : index
    %182 = vector.load %arg9[%c1_193, %c160_194] : memref<7x224xbf16, #tpu.memory_space<vmem>>, vector<5x32xbf16>
    %cst_195 = arith.constant dense<0.000000e+00> : vector<5x32xf32>
    %183 = tpu.matmul %182, %181, %cst_195 {dimension_numbers = #tpu.dot_dimension_numbers<[1], [0], [0], [1], [0, 0, 1, 1], [], []>} : vector<5x32xbf16>, vector<32x32xbf16>, vector<5x32xf32> -> vector<5x32xf32>
    %184 = arith.addf %180, %183 : vector<5x32xf32>
    %c192_196 = arith.constant 192 : index
    %c0_197 = arith.constant 0 : index
    %185 = vector.load %arg4[%c192_196, %c0_197] : memref<288x32xbf16, #tpu.memory_space<vmem>>, vector<32x32xbf16>
    %c2_198 = arith.constant 2 : index
    %c96_199 = arith.constant 96 : index
    %186 = vector.load %arg9[%c2_198, %c96_199] : memref<7x224xbf16, #tpu.memory_space<vmem>>, vector<5x32xbf16>
    %cst_200 = arith.constant dense<0.000000e+00> : vector<5x32xf32>
    %187 = tpu.matmul %186, %185, %cst_200 {dimension_numbers = #tpu.dot_dimension_numbers<[1], [0], [0], [1], [0, 0, 1, 1], [], []>} : vector<5x32xbf16>, vector<32x32xbf16>, vector<5x32xf32> -> vector<5x32xf32>
    %188 = arith.addf %184, %187 : vector<5x32xf32>
    %c224_201 = arith.constant 224 : index
    %c0_202 = arith.constant 0 : index
    %189 = vector.load %arg4[%c224_201, %c0_202] : memref<288x32xbf16, #tpu.memory_space<vmem>>, vector<32x32xbf16>
    %c2_203 = arith.constant 2 : index
    %c128_204 = arith.constant 128 : index
    %190 = vector.load %arg9[%c2_203, %c128_204] : memref<7x224xbf16, #tpu.memory_space<vmem>>, vector<5x32xbf16>
    %cst_205 = arith.constant dense<0.000000e+00> : vector<5x32xf32>
    %191 = tpu.matmul %190, %189, %cst_205 {dimension_numbers = #tpu.dot_dimension_numbers<[1], [0], [0], [1], [0, 0, 1, 1], [], []>} : vector<5x32xbf16>, vector<32x32xbf16>, vector<5x32xf32> -> vector<5x32xf32>
    %192 = arith.addf %188, %191 : vector<5x32xf32>
    %c256_206 = arith.constant 256 : index
    %c0_207 = arith.constant 0 : index
    %193 = vector.load %arg4[%c256_206, %c0_207] : memref<288x32xbf16, #tpu.memory_space<vmem>>, vector<32x32xbf16>
    %c2_208 = arith.constant 2 : index
    %c160_209 = arith.constant 160 : index
    %194 = vector.load %arg9[%c2_208, %c160_209] : memref<7x224xbf16, #tpu.memory_space<vmem>>, vector<5x32xbf16>
    %cst_210 = arith.constant dense<0.000000e+00> : vector<5x32xf32>
    %195 = tpu.matmul %194, %193, %cst_210 {dimension_numbers = #tpu.dot_dimension_numbers<[1], [0], [0], [1], [0, 0, 1, 1], [], []>} : vector<5x32xbf16>, vector<32x32xbf16>, vector<5x32xf32> -> vector<5x32xf32>
    %196 = arith.addf %192, %195 : vector<5x32xf32>
    %c0_211 = arith.constant 0 : index
    %c0_212 = arith.constant 0 : index
    %197 = vector.load %arg5[%c0_211, %c0_212] : memref<1x32xf32, #tpu.memory_space<vmem>>, vector<1x32xf32>
    %198 = vector.broadcast %197 : vector<1x32xf32> to vector<5x32xf32>
    %199 = arith.addf %196, %198 : vector<5x32xf32>
    %cst_213 = arith.constant 0.000000e+00 : f32
    %200 = vector.broadcast %cst_213 : f32 to vector<5x32xf32>
    %201 = arith.maximumf %199, %200 : vector<5x32xf32>
    %202 = arith.truncf %201 : vector<5x32xf32> to vector<5x32xbf16>
    %c96_214 = arith.constant 96 : index
    %c0_215 = arith.constant 0 : index
    %203 = vector.load %arg6[%c96_214, %c0_215] : memref<160x32xbf16, #tpu.memory_space<vmem>>, vector<32x32xbf16>
    %cst_216 = arith.constant dense<0.000000e+00> : vector<5x32xf32>
    %204 = tpu.matmul %202, %203, %cst_216 {dimension_numbers = #tpu.dot_dimension_numbers<[1], [0], [0], [1], [0, 0, 1, 1], [], []>} : vector<5x32xbf16>, vector<32x32xbf16>, vector<5x32xf32> -> vector<5x32xf32>
    %205 = arith.addf %159, %204 : vector<5x32xf32>
    %cst_217 = arith.constant 0.000000e+00 : f32
    %206 = vector.broadcast %cst_217 : f32 to vector<5x32xf32>
    %c0_218 = arith.constant 0 : index
    %c0_219 = arith.constant 0 : index
    %207 = vector.load %arg4[%c0_218, %c0_219] : memref<288x32xbf16, #tpu.memory_space<vmem>>, vector<32x32xbf16>
    %c0_220 = arith.constant 0 : index
    %c128_221 = arith.constant 128 : index
    %208 = vector.load %arg9[%c0_220, %c128_221] : memref<7x224xbf16, #tpu.memory_space<vmem>>, vector<5x32xbf16>
    %cst_222 = arith.constant dense<0.000000e+00> : vector<5x32xf32>
    %209 = tpu.matmul %208, %207, %cst_222 {dimension_numbers = #tpu.dot_dimension_numbers<[1], [0], [0], [1], [0, 0, 1, 1], [], []>} : vector<5x32xbf16>, vector<32x32xbf16>, vector<5x32xf32> -> vector<5x32xf32>
    %210 = arith.addf %206, %209 : vector<5x32xf32>
    %c32_223 = arith.constant 32 : index
    %c0_224 = arith.constant 0 : index
    %211 = vector.load %arg4[%c32_223, %c0_224] : memref<288x32xbf16, #tpu.memory_space<vmem>>, vector<32x32xbf16>
    %c0_225 = arith.constant 0 : index
    %c160_226 = arith.constant 160 : index
    %212 = vector.load %arg9[%c0_225, %c160_226] : memref<7x224xbf16, #tpu.memory_space<vmem>>, vector<5x32xbf16>
    %cst_227 = arith.constant dense<0.000000e+00> : vector<5x32xf32>
    %213 = tpu.matmul %212, %211, %cst_227 {dimension_numbers = #tpu.dot_dimension_numbers<[1], [0], [0], [1], [0, 0, 1, 1], [], []>} : vector<5x32xbf16>, vector<32x32xbf16>, vector<5x32xf32> -> vector<5x32xf32>
    %214 = arith.addf %210, %213 : vector<5x32xf32>
    %c64_228 = arith.constant 64 : index
    %c0_229 = arith.constant 0 : index
    %215 = vector.load %arg4[%c64_228, %c0_229] : memref<288x32xbf16, #tpu.memory_space<vmem>>, vector<32x32xbf16>
    %c0_230 = arith.constant 0 : index
    %c192_231 = arith.constant 192 : index
    %216 = vector.load %arg9[%c0_230, %c192_231] : memref<7x224xbf16, #tpu.memory_space<vmem>>, vector<5x32xbf16>
    %cst_232 = arith.constant dense<0.000000e+00> : vector<5x32xf32>
    %217 = tpu.matmul %216, %215, %cst_232 {dimension_numbers = #tpu.dot_dimension_numbers<[1], [0], [0], [1], [0, 0, 1, 1], [], []>} : vector<5x32xbf16>, vector<32x32xbf16>, vector<5x32xf32> -> vector<5x32xf32>
    %218 = arith.addf %214, %217 : vector<5x32xf32>
    %c96_233 = arith.constant 96 : index
    %c0_234 = arith.constant 0 : index
    %219 = vector.load %arg4[%c96_233, %c0_234] : memref<288x32xbf16, #tpu.memory_space<vmem>>, vector<32x32xbf16>
    %c1_235 = arith.constant 1 : index
    %c128_236 = arith.constant 128 : index
    %220 = vector.load %arg9[%c1_235, %c128_236] : memref<7x224xbf16, #tpu.memory_space<vmem>>, vector<5x32xbf16>
    %cst_237 = arith.constant dense<0.000000e+00> : vector<5x32xf32>
    %221 = tpu.matmul %220, %219, %cst_237 {dimension_numbers = #tpu.dot_dimension_numbers<[1], [0], [0], [1], [0, 0, 1, 1], [], []>} : vector<5x32xbf16>, vector<32x32xbf16>, vector<5x32xf32> -> vector<5x32xf32>
    %222 = arith.addf %218, %221 : vector<5x32xf32>
    %c128_238 = arith.constant 128 : index
    %c0_239 = arith.constant 0 : index
    %223 = vector.load %arg4[%c128_238, %c0_239] : memref<288x32xbf16, #tpu.memory_space<vmem>>, vector<32x32xbf16>
    %c1_240 = arith.constant 1 : index
    %c160_241 = arith.constant 160 : index
    %224 = vector.load %arg9[%c1_240, %c160_241] : memref<7x224xbf16, #tpu.memory_space<vmem>>, vector<5x32xbf16>
    %cst_242 = arith.constant dense<0.000000e+00> : vector<5x32xf32>
    %225 = tpu.matmul %224, %223, %cst_242 {dimension_numbers = #tpu.dot_dimension_numbers<[1], [0], [0], [1], [0, 0, 1, 1], [], []>} : vector<5x32xbf16>, vector<32x32xbf16>, vector<5x32xf32> -> vector<5x32xf32>
    %226 = arith.addf %222, %225 : vector<5x32xf32>
    %c160_243 = arith.constant 160 : index
    %c0_244 = arith.constant 0 : index
    %227 = vector.load %arg4[%c160_243, %c0_244] : memref<288x32xbf16, #tpu.memory_space<vmem>>, vector<32x32xbf16>
    %c1_245 = arith.constant 1 : index
    %c192_246 = arith.constant 192 : index
    %228 = vector.load %arg9[%c1_245, %c192_246] : memref<7x224xbf16, #tpu.memory_space<vmem>>, vector<5x32xbf16>
    %cst_247 = arith.constant dense<0.000000e+00> : vector<5x32xf32>
    %229 = tpu.matmul %228, %227, %cst_247 {dimension_numbers = #tpu.dot_dimension_numbers<[1], [0], [0], [1], [0, 0, 1, 1], [], []>} : vector<5x32xbf16>, vector<32x32xbf16>, vector<5x32xf32> -> vector<5x32xf32>
    %230 = arith.addf %226, %229 : vector<5x32xf32>
    %c192_248 = arith.constant 192 : index
    %c0_249 = arith.constant 0 : index
    %231 = vector.load %arg4[%c192_248, %c0_249] : memref<288x32xbf16, #tpu.memory_space<vmem>>, vector<32x32xbf16>
    %c2_250 = arith.constant 2 : index
    %c128_251 = arith.constant 128 : index
    %232 = vector.load %arg9[%c2_250, %c128_251] : memref<7x224xbf16, #tpu.memory_space<vmem>>, vector<5x32xbf16>
    %cst_252 = arith.constant dense<0.000000e+00> : vector<5x32xf32>
    %233 = tpu.matmul %232, %231, %cst_252 {dimension_numbers = #tpu.dot_dimension_numbers<[1], [0], [0], [1], [0, 0, 1, 1], [], []>} : vector<5x32xbf16>, vector<32x32xbf16>, vector<5x32xf32> -> vector<5x32xf32>
    %234 = arith.addf %230, %233 : vector<5x32xf32>
    %c224_253 = arith.constant 224 : index
    %c0_254 = arith.constant 0 : index
    %235 = vector.load %arg4[%c224_253, %c0_254] : memref<288x32xbf16, #tpu.memory_space<vmem>>, vector<32x32xbf16>
    %c2_255 = arith.constant 2 : index
    %c160_256 = arith.constant 160 : index
    %236 = vector.load %arg9[%c2_255, %c160_256] : memref<7x224xbf16, #tpu.memory_space<vmem>>, vector<5x32xbf16>
    %cst_257 = arith.constant dense<0.000000e+00> : vector<5x32xf32>
    %237 = tpu.matmul %236, %235, %cst_257 {dimension_numbers = #tpu.dot_dimension_numbers<[1], [0], [0], [1], [0, 0, 1, 1], [], []>} : vector<5x32xbf16>, vector<32x32xbf16>, vector<5x32xf32> -> vector<5x32xf32>
    %238 = arith.addf %234, %237 : vector<5x32xf32>
    %c256_258 = arith.constant 256 : index
    %c0_259 = arith.constant 0 : index
    %239 = vector.load %arg4[%c256_258, %c0_259] : memref<288x32xbf16, #tpu.memory_space<vmem>>, vector<32x32xbf16>
    %c2_260 = arith.constant 2 : index
    %c192_261 = arith.constant 192 : index
    %240 = vector.load %arg9[%c2_260, %c192_261] : memref<7x224xbf16, #tpu.memory_space<vmem>>, vector<5x32xbf16>
    %cst_262 = arith.constant dense<0.000000e+00> : vector<5x32xf32>
    %241 = tpu.matmul %240, %239, %cst_262 {dimension_numbers = #tpu.dot_dimension_numbers<[1], [0], [0], [1], [0, 0, 1, 1], [], []>} : vector<5x32xbf16>, vector<32x32xbf16>, vector<5x32xf32> -> vector<5x32xf32>
    %242 = arith.addf %238, %241 : vector<5x32xf32>
    %c0_263 = arith.constant 0 : index
    %c0_264 = arith.constant 0 : index
    %243 = vector.load %arg5[%c0_263, %c0_264] : memref<1x32xf32, #tpu.memory_space<vmem>>, vector<1x32xf32>
    %244 = vector.broadcast %243 : vector<1x32xf32> to vector<5x32xf32>
    %245 = arith.addf %242, %244 : vector<5x32xf32>
    %cst_265 = arith.constant 0.000000e+00 : f32
    %246 = vector.broadcast %cst_265 : f32 to vector<5x32xf32>
    %247 = arith.maximumf %245, %246 : vector<5x32xf32>
    %248 = arith.truncf %247 : vector<5x32xf32> to vector<5x32xbf16>
    %c128_266 = arith.constant 128 : index
    %c0_267 = arith.constant 0 : index
    %249 = vector.load %arg6[%c128_266, %c0_267] : memref<160x32xbf16, #tpu.memory_space<vmem>>, vector<32x32xbf16>
    %cst_268 = arith.constant dense<0.000000e+00> : vector<5x32xf32>
    %250 = tpu.matmul %248, %249, %cst_268 {dimension_numbers = #tpu.dot_dimension_numbers<[1], [0], [0], [1], [0, 0, 1, 1], [], []>} : vector<5x32xbf16>, vector<32x32xbf16>, vector<5x32xf32> -> vector<5x32xf32>
    %251 = arith.addf %205, %250 : vector<5x32xf32>
    %c0_269 = arith.constant 0 : index
    %c0_270 = arith.constant 0 : index
    %c0_271 = arith.constant 0 : index
    %252 = vector.load %arg8[%c0_269, %c0_270, %c0_271] : memref<1x5x32xf32, #tpu.memory_space<vmem>>, vector<1x5x32xf32>
    %253 = vector.shape_cast %252 : vector<1x5x32xf32> to vector<5x32xf32>
    %254 = vector.shape_cast %251 : vector<5x32xf32> to vector<1x5x32xf32>
    tpu.vector_store %arg8[%c0_269, %c0_270, %c0_271], %254 {strides = array<i32>} : memref<1x5x32xf32, #tpu.memory_space<vmem>>, vector<1x5x32xf32>,
    return
  }
  func.func @transform_0(%arg0: i32) -> (i32, i32, i32) {
    %c0_i32 = arith.constant 0 : i32
    %c0_i32_0 = arith.constant 0 : i32
    %c0_i32_1 = arith.constant 0 : i32
    return %arg0, %c0_i32, %c0_i32_0 : i32, i32, i32
  }
  func.func @transform_1(%arg0: i32) -> (i32, i32) {
    %c0_i32 = arith.constant 0 : i32
    %c0_i32_0 = arith.constant 0 : i32
    %c0_i32_1 = arith.constant 0 : i32
    return %c0_i32, %c0_i32_0 : i32, i32
  }
  func.func @transform_2(%arg0: i32) -> (i32, i32) {
    %c0_i32 = arith.constant 0 : i32
    %c0_i32_0 = arith.constant 0 : i32
    %c0_i32_1 = arith.constant 0 : i32
    return %c0_i32, %c0_i32_0 : i32, i32
  }
  func.func @transform_3(%arg0: i32) -> (i32, i32) {
    %c0_i32 = arith.constant 0 : i32
    %c0_i32_0 = arith.constant 0 : i32
    %c0_i32_1 = arith.constant 0 : i32
    return %c0_i32, %c0_i32_0 : i32, i32
  }
  func.func @transform_4(%arg0: i32) -> (i32, i32) {
    %c0_i32 = arith.constant 0 : i32
    %c0_i32_0 = arith.constant 0 : i32
    %c0_i32_1 = arith.constant 0 : i32
    return %c0_i32, %c0_i32_0 : i32, i32
  }
  func.func @transform_5(%arg0: i32) -> (i32, i32) {
    %c0_i32 = arith.constant 0 : i32
    %c0_i32_0 = arith.constant 0 : i32
    %c0_i32_1 = arith.constant 0 : i32
    return %c0_i32, %c0_i32_0 : i32, i32
  }
  func.func @transform_6(%arg0: i32) -> (i32, i32) {
    %c0_i32 = arith.constant 0 : i32
    %c0_i32_0 = arith.constant 0 : i32
    %c0_i32_1 = arith.constant 0 : i32
    return %c0_i32, %c0_i32_0 : i32, i32
  }
  func.func @transform_7(%arg0: i32) -> (i32, i32, i32) {
    %c0_i32 = arith.constant 0 : i32
    %c0_i32_0 = arith.constant 0 : i32
    %c0_i32_1 = arith.constant 0 : i32
    return %arg0, %c0_i32, %c0_i32_0 : i32, i32, i32
  }
}

</mosaic_0001>

<llo_original>
// kernel: speech_embedding_forward.1
$region0: #{speech_embedding_forward.1}
  #allocation0 [shape = 'u32[]', space=smem, size = 0x4, offset = 0x4, fixed_abs, tag = 'smem constant byte address 0x4 - core index']
  #allocation1 [shape = 'u32[72,128]{1,0:T(1,128)}', space=vmem, size = 0x9000, scoped, tag = 'internal scratch']
  #allocation2 [shape = 'bf16[7,224]{1,0:T(8,128)(2,1)}', space=vmem, size = 0x1000, scoped, tag = 'scratch operand']
  %s0 = inlined_call_operand.vmem [shape: f32[2,8,32], index: 0, kind: input, shape index: {}]
  %s1 = inlined_call_operand.hbm [shape: f32[64,224], index: 1, kind: input, shape index: {}]
  %s2 = inlined_call_operand.vmem [shape: f32[1,224], index: 2, kind: input, shape index: {}]
  %s3 = inlined_call_operand.hbm [shape: bf16[288,32], index: 3, kind: input, shape index: {}]
  %s4 = inlined_call_operand.vmem [shape: f32[1,32], index: 4, kind: input, shape index: {}]
  %s5 = inlined_call_operand.hbm [shape: bf16[160,32], index: 5, kind: input, shape index: {}]
  %s6 = inlined_call_operand.vmem [shape: f32[1,32], index: 6, kind: input, shape index: {}]
  %s7 = inlined_call_operand.vmem [shape: f32[2,5,32], index: 7, kind: output, shape index: {}]
  %s8 = sld [smem:[#allocation0]]
  $region73: #{speech_embedding_forward.1} parent=0
    _
  %s10 = ssub.s32 1, %s8
  %s11 = scalar_select 0, %s10, %s8
  $region1: #{speech_embedding_forward.1} parent=0
    #allocation3 [shape = 'u8[65536]{0}', space=vmem, size = 0x10000, scoped, tag = 'input window, operand 1, single buffered']
    #allocation4 [shape = 's32[2]{0}', space=sflag, size = 0x8, scoped, tag = 'scoped memory for speech_embedding_forward.1']
    #allocation5 [shape = 'u8[73728]{0}', space=vmem, size = 0x12000, scoped, tag = 'input window, operand 3, single buffered']
    #allocation6 [shape = 's32[1]{0}', space=sflag, size = 0x4, scoped, tag = 'scoped memory for speech_embedding_forward.1']
    #allocation7 [shape = 'u8[40960]{0}', space=vmem, size = 0xa000, scoped, tag = 'input window, operand 5, single buffered']
    %12 = vsyncpa [#allocation4], 0
    %13 = vsyncpa [#allocation6], 0
    loop: start=0, step=1, limit=4
    $region2: #{speech_embedding_forward.1} parent=1 // loop_pre_header
      _
    $region3: #{speech_embedding_forward.1} parent=1 // loop_header
      %s15 = sphi 0, %s19
      %p16 = scmp.ge.s32.totalorder %s15, 4
      %s25 = sphi 0, %s27
      %s28 = sphi 0, %s25
      %s29 = sphi 0, %s28
      %s45 = sphi 0, %s29
      %s49 = sphi 0, %s49
      %s51 = sphi 0, %s49
      %s52 = sphi 0, %s51
      %s66 = sphi 0, %s52
      %s70 = sphi 0, %s70
      %s72 = sphi 0, %s70
      %s73 = sphi 0, %s72
      %s87 = sphi 0, %s73
      %s91 = sphi 0, %s91
      %s93 = sphi 0, %s91
      %s94 = sphi 0, %s93
      %s108 = sphi 0, %s94
      %s112 = sphi 0, %s112
      %s114 = sphi 0, %s112
      %s115 = sphi 0, %s114
      %s129 = sphi 0, %s115
      %s133 = sphi 0, %s133
      %s135 = sphi 0, %s133
      %s136 = sphi 0, %s135
      %s150 = sphi 0, %s136
      %s154 = sphi 0, %s154
      %s156 = sphi 0, %s154
      %s157 = sphi 0, %s156
      %s171 = sphi 0, %s157
      %s177 = sphi 0, %s179
      %s180 = sphi 0, %s177
      %s181 = sphi 0, %s180
      %s197 = sphi 0, %s181
    $region4: #{speech_embedding_forward.1} parent=1 // loop_header_branch
      %18 = sbr.rel (%p16) target = $region8
    $region5: #{speech_embedding_forward.1} parent=1 // loop_body
      %s20 = ssub.s32 %s15, 1
      %s21 = ssub.s32 %s15, 2
      %s22 = sadd.s32 %s15, 1
      %s23 = ssub.s32 %s15, %s22
      %p24 = scmp.eq.s32.totalorder %s23, 0
      %s26 = sadd.s32 %s25, 1
      %s27 = scalar_select %p24, %s25, %s26
      %p30 = pneg %p24
      %p31 = scmp.eq.s32.totalorder %s15, 1
      %p32 = por %p30, %p31
      %p33 = scmp.ne.s32.totalorder %s25, %s28
      %p34 = scmp.eq.s32.totalorder %s15, 0
      %p35 = por %p33, %p34
      %p36 = scmp.ne.s32.totalorder %s25, %s28
      %p37 = scmp.eq.s32.totalorder %s20, 1
      %p38 = por %p36, %p37
      %p39 = scmp.ne.s32.totalorder %s28, %s29
      %p40 = scmp.eq.s32.totalorder %s20, 0
      %p41 = por %p39, %p40
      %p42 = scmp.ne.s32.totalorder %s28, %s29
      %p43 = scmp.eq.s32.totalorder %s21, 1
      %p44 = por %p42, %p43
      %p46 = scmp.ne.s32.totalorder %s29, %s45
      %p47 = scmp.eq.s32.totalorder %s21, 0
      %p48 = por %p46, %p47
      %s50 = sadd.s32 %s49, 1
      %p53 = scmp.eq.s32.totalorder %s15, 1
      %p54 = scmp.ne.s32.totalorder %s49, %s51
      %p55 = scmp.eq.s32.totalorder %s15, 0
      %p56 = por %p54, %p55
      %p57 = scmp.ne.s32.totalorder %s49, %s51
      %p58 = scmp.eq.s32.totalorder %s20, 1
      %p59 = por %p57, %p58
      %p60 = scmp.ne.s32.totalorder %s51, %s52
      %p61 = scmp.eq.s32.totalorder %s20, 0
      %p62 = por %p60, %p61
      %p63 = scmp.ne.s32.totalorder %s51, %s52
      %p64 = scmp.eq.s32.totalorder %s21, 1
      %p65 = por %p63, %p64
      %p67 = scmp.ne.s32.totalorder %s52, %s66
      %p68 = scmp.eq.s32.totalorder %s21, 0
      %p69 = por %p67, %p68
      %s71 = sadd.s32 %s70, 1
      %p74 = scmp.eq.s32.totalorder %s15, 1
      %p75 = scmp.ne.s32.totalorder %s70, %s72
      %p76 = scmp.eq.s32.totalorder %s15, 0
      %p77 = por %p75, %p76
      %p78 = scmp.ne.s32.totalorder %s70, %s72
      %p79 = scmp.eq.s32.totalorder %s20, 1
      %p80 = por %p78, %p79
      %p81 = scmp.ne.s32.totalorder %s72, %s73
      %p82 = scmp.eq.s32.totalorder %s20, 0
      %p83 = por %p81, %p82
      %p84 = scmp.ne.s32.totalorder %s72, %s73
      %p85 = scmp.eq.s32.totalorder %s21, 1
      %p86 = por %p84, %p85
      %p88 = scmp.ne.s32.totalorder %s73, %s87
      %p89 = scmp.eq.s32.totalorder %s21, 0
      %p90 = por %p88, %p89
      %s92 = sadd.s32 %s91, 1
      %p95 = scmp.eq.s32.totalorder %s15, 1
      %p96 = scmp.ne.s32.totalorder %s91, %s93
      %p97 = scmp.eq.s32.totalorder %s15, 0
      %p98 = por %p96, %p97
      %p99 = scmp.ne.s32.totalorder %s91, %s93
      %p100 = scmp.eq.s32.totalorder %s20, 1
      %p101 = por %p99, %p100
      %p102 = scmp.ne.s32.totalorder %s93, %s94
      %p103 = scmp.eq.s32.totalorder %s20, 0
      %p104 = por %p102, %p103
      %p105 = scmp.ne.s32.totalorder %s93, %s94
      %p106 = scmp.eq.s32.totalorder %s21, 1
      %p107 = por %p105, %p106
      %p109 = scmp.ne.s32.totalorder %s94, %s108
      %p110 = scmp.eq.s32.totalorder %s21, 0
      %p111 = por %p109, %p110
      %s113 = sadd.s32 %s112, 1
      %p116 = scmp.eq.s32.totalorder %s15, 1
      %p117 = scmp.ne.s32.totalorder %s112, %s114
      %p118 = scmp.eq.s32.totalorder %s15, 0
      %p119 = por %p117, %p118
      %p120 = scmp.ne.s32.totalorder %s112, %s114
      %p121 = scmp.eq.s32.totalorder %s20, 1
      %p122 = por %p120, %p121
      %p123 = scmp.ne.s32.totalorder %s114, %s115
      %p124 = scmp.eq.s32.totalorder %s20, 0
      %p125 = por %p123, %p124
      %p126 = scmp.ne.s32.totalorder %s114, %s115
      %p127 = scmp.eq.s32.totalorder %s21, 1
      %p128 = por %p126, %p127
      %p130 = scmp.ne.s32.totalorder %s115, %s129
      %p131 = scmp.eq.s32.totalorder %s21, 0
      %p132 = por %p130, %p131
      %s134 = sadd.s32 %s133, 1
      %p137 = scmp.eq.s32.totalorder %s15, 1
      %p138 = scmp.ne.s32.totalorder %s133, %s135
      %p139 = scmp.eq.s32.totalorder %s15, 0
      %p140 = por %p138, %p139
      %p141 = scmp.ne.s32.totalorder %s133, %s135
      %p142 = scmp.eq.s32.totalorder %s20, 1
      %p143 = por %p141, %p142
      %p144 = scmp.ne.s32.totalorder %s135, %s136
      %p145 = scmp.eq.s32.totalorder %s20, 0
      %p146 = por %p144, %p145
      %p147 = scmp.ne.s32.totalorder %s135, %s136
      %p148 = scmp.eq.s32.totalorder %s21, 1
      %p149 = por %p147, %p148
      %p151 = scmp.ne.s32.totalorder %s136, %s150
      %p152 = scmp.eq.s32.totalorder %s21, 0
      %p153 = por %p151, %p152
      %s155 = sadd.s32 %s154, 1
      %p158 = scmp.eq.s32.totalorder %s15, 1
      %p159 = scmp.ne.s32.totalorder %s154, %s156
      %p160 = scmp.eq.s32.totalorder %s15, 0
      %p161 = por %p159, %p160
      %p162 = scmp.ne.s32.totalorder %s154, %s156
      %p163 = scmp.eq.s32.totalorder %s20, 1
      %p164 = por %p162, %p163
      %p165 = scmp.ne.s32.totalorder %s156, %s157
      %p166 = scmp.eq.s32.totalorder %s20, 0
      %p167 = por %p165, %p166
      %p168 = scmp.ne.s32.totalorder %s156, %s157
      %p169 = scmp.eq.s32.totalorder %s21, 1
      %p170 = por %p168, %p169
      %p172 = scmp.ne.s32.totalorder %s157, %s171
      %p173 = scmp.eq.s32.totalorder %s21, 0
      %p174 = por %p172, %p173
      %s175 = ssub.s32 %s15, %s22
      %p176 = scmp.eq.s32.totalorder %s175, 0
      %s178 = sadd.s32 %s177, 1
      %s179 = scalar_select %p176, %s177, %s178
      %p182 = pneg %p176
      %p183 = scmp.eq.s32.totalorder %s15, 1
      %p184 = por %p182, %p183
      %p185 = scmp.ne.s32.totalorder %s177, %s180
      %p186 = scmp.eq.s32.totalorder %s15, 0
      %p187 = por %p185, %p186
      %p188 = scmp.ne.s32.totalorder %s177, %s180
      %p189 = scmp.eq.s32.totalorder %s20, 1
      %p190 = por %p188, %p189
      %p191 = scmp.ne.s32.totalorder %s180, %s181
      %p192 = scmp.eq.s32.totalorder %s20, 0
      %p193 = por %p191, %p192
      %p194 = scmp.ne.s32.totalorder %s180, %s181
      %p195 = scmp.eq.s32.totalorder %s21, 1
      %p196 = por %p194, %p195
      %p198 = scmp.ne.s32.totalorder %s181, %s197
      %p199 = scmp.eq.s32.totalorder %s21, 0
      %p200 = por %p198, %p199
      %p201 = scmp.le.s32.totalorder 1, %s15
      %p202 = scmp.lt.s32.totalorder %s15, 3
      %p203 = pnand %p201, %p202
      %p204 = pneg %p203
      // Predicated region
      $region9: #{speech_embedding_forward.1} parent=5 // pred_check
        _
      $region10: #{speech_embedding_forward.1} parent=5 // pred_check_branch
        %206 = sbr.rel (%p203) target = $region12
      $region11: #{speech_embedding_forward.1} parent=5 // pred_region
        %s207 = ssub.s32 %s15, 1
        // Predicated region
        $region13: #{speech_embedding_forward.1} parent=11 // pred_check
          %p208 = pneg %p62
        $region14: #{speech_embedding_forward.1} parent=11 // pred_check_branch
          %210 = sbr.rel (%p208) target = $region16
        $region15: #{speech_embedding_forward.1} parent=11 // pred_region
          %212 = vsyncadd [#allocation4], 0
          %s213 = sshll.u32 %s1, 4
          %s214 = int_to_ptr.hbm [resolvable:$true] %s213
          %s215 = sshll.u32 [#allocation3], 4
          %s216 = int_to_ptr.vmem [resolvable:$true] %s215
          %221 = dma.hbm_to_vmem [thread:$0]  %s214, 2048, %s216, [#allocation4], 256, 256, 16
        $region16: #{speech_embedding_forward.1} parent=11 // pred_fallthru
          _
        // Predicated region
        $region17: #{speech_embedding_forward.1} parent=11 // pred_check
          %p222 = pneg %p83
        $region18: #{speech_embedding_forward.1} parent=11 // pred_check_branch
          %224 = sbr.rel (%p222) target = $region20
        $region19: #{speech_embedding_forward.1} parent=11 // pred_region
          _
        $region20: #{speech_embedding_forward.1} parent=11 // pred_fallthru
          _
        // Predicated region
        $region21: #{speech_embedding_forward.1} parent=11 // pred_check
          %p225 = pneg %p104
        $region22: #{speech_embedding_forward.1} parent=11 // pred_check_branch
          %227 = sbr.rel (%p225) target = $region24
        $region23: #{speech_embedding_forward.1} parent=11 // pred_region
          %229 = vsyncadd [#allocation6], 0
          %s230 = sshll.u32 %s3, 4
          %s231 = int_to_ptr.hbm [resolvable:$true] %s230
          %s232 = sshll.u32 [#allocation5], 4
          %s233 = int_to_ptr.vmem [resolvable:$true] %s232
          %238 = dma.hbm_to_vmem [thread:$0]  %s231, 2304, %s233, [#allocation6], 64, 64, 4
        $region24: #{speech_embedding_forward.1} parent=11 // pred_fallthru
          _
        // Predicated region
        $region25: #{speech_embedding_forward.1} parent=11 // pred_check
          %p239 = pneg %p125
        $region26: #{speech_embedding_forward.1} parent=11 // pred_check_branch
          %241 = sbr.rel (%p239) target = $region28
        $region27: #{speech_embedding_forward.1} parent=11 // pred_region
          _
        $region28: #{speech_embedding_forward.1} parent=11 // pred_fallthru
          _
        // Predicated region
        $region29: #{speech_embedding_forward.1} parent=11 // pred_check
          %p242 = pneg %p146
        $region30: #{speech_embedding_forward.1} parent=11 // pred_check_branch
          %244 = sbr.rel (%p242) target = $region32
        $region31: #{speech_embedding_forward.1} parent=11 // pred_region
          %246 = vsyncadd [#allocation6], 0
          %s247 = sshll.u32 %s5, 4
          %s248 = int_to_ptr.hbm [resolvable:$true] %s247
          %s249 = sshll.u32 [#allocation7], 4
          %s250 = int_to_ptr.vmem [resolvable:$true] %s249
          %255 = dma.hbm_to_vmem [thread:$0]  %s248, 1280, %s250, [#allocation6], 64, 64, 4
        $region32: #{speech_embedding_forward.1} parent=11 // pred_fallthru
          _
        // Predicated region
        $region33: #{speech_embedding_forward.1} parent=11 // pred_check
          %p256 = pneg %p167
        $region34: #{speech_embedding_forward.1} parent=11 // pred_check_branch
          %258 = sbr.rel (%p256) target = $region36
        $region35: #{speech_embedding_forward.1} parent=11 // pred_region
          _
        $region36: #{speech_embedding_forward.1} parent=11 // pred_fallthru
          _
      $region12: #{speech_embedding_forward.1} parent=5 // pred_fallthru
        _
      %p259 = scmp.lt.s32.totalorder %s15, 2
      // Predicated region
      $region37: #{speech_embedding_forward.1} parent=5 // pred_check
        %p260 = pneg %p259
      $region38: #{speech_embedding_forward.1} parent=5 // pred_check_branch
        %262 = sbr.rel (%p260) target = $region40
      $region39: #{speech_embedding_forward.1} parent=5 // pred_region
        // Predicated region
        $region41: #{speech_embedding_forward.1} parent=39 // pred_check
          %p263 = pneg %p35
        $region42: #{speech_embedding_forward.1} parent=39 // pred_check_branch
          %265 = sbr.rel (%p263) target = $region44
        $region43: #{speech_embedding_forward.1} parent=39 // pred_region
          %p266 = scmp.lt.s32.totalorder %s15, 1
          %s267 = scalar_select %p266, %s15, 1
          %s268 = smul.addr %s267, 8
          %s269 = scalar_lea.vmem %s0, %s268
        $region44: #{speech_embedding_forward.1} parent=39 // pred_fallthru
          _
      $region40: #{speech_embedding_forward.1} parent=5 // pred_fallthru
        _
      %p270 = scmp.le.s32.totalorder 1, %s15
      %p271 = scmp.lt.s32.totalorder %s15, 3
      %p272 = pnand %p270, %p271
      %p273 = pneg %p272
      // Predicated region
      $region45: #{speech_embedding_forward.1} parent=5 // pred_check
        _
      $region46: #{speech_embedding_forward.1} parent=5 // pred_check_branch
        %275 = sbr.rel (%p272) target = $region48
      $region47: #{speech_embedding_forward.1} parent=5 // pred_region
        %s276 = ssub.s32 %s15, 1
        // Predicated region
        $region49: #{speech_embedding_forward.1} parent=47 // pred_check
          %p277 = pneg %p62
        $region50: #{speech_embedding_forward.1} parent=47 // pred_check_branch
          %279 = sbr.rel (%p277) target = $region52
        $region51: #{speech_embedding_forward.1} parent=47 // pred_region
          %281 = dma.done [#allocation4], 2048
        $region52: #{speech_embedding_forward.1} parent=47 // pred_fallthru
          _
        // Predicated region
        $region53: #{speech_embedding_forward.1} parent=47 // pred_check
          %p282 = pneg %p104
        $region54: #{speech_embedding_forward.1} parent=47 // pred_check_branch
          %284 = sbr.rel (%p282) target = $region56
        $region55: #{speech_embedding_forward.1} parent=47 // pred_region
          %286 = dma.done [#allocation6], 2304
        $region56: #{speech_embedding_forward.1} parent=47 // pred_fallthru
          _
        // Predicated region
        $region57: #{speech_embedding_forward.1} parent=47 // pred_check
          %p287 = pneg %p146
        $region58: #{speech_embedding_forward.1} parent=47 // pred_check_branch
          %289 = sbr.rel (%p287) target = $region60
        $region59: #{speech_embedding_forward.1} parent=47 // pred_region
          %291 = dma.done [#allocation6], 1280
        $region60: #{speech_embedding_forward.1} parent=47 // pred_fallthru
          _
        %p292 = scmp.lt.s32.totalorder %s20, 1
        %s293 = scalar_select %p292, %s20, 1
        %s294 = smul.addr %s293, 8
        %s295 = scalar_lea.vmem %s0, %s294
        %p296 = pneg %p41
        %p297 = pneg %p38
        %p298 = pneg %p62
        %p299 = pneg %p59
        %p300 = pneg %p83
        %p301 = pneg %p80
        %p302 = pneg %p104
        %p303 = pneg %p101
        %p304 = pneg %p125
        %p305 = pneg %p122
        %p306 = pneg %p146
        %p307 = pneg %p143
        %p308 = pneg %p167
        %p309 = pneg %p164
        %p310 = pneg %p193
        %p311 = pneg %p190
        %p312 = scmp.lt.s32.totalorder %s20, 1
        %s313 = scalar_select %p312, %s20, 1
        %s314 = smul.addr %s313, 8
        %s315 = scalar_lea.vmem %s7, %s314
        %p316 = scmp.lt.s32.totalorder %s20, 1
        %s317 = scalar_select %p316, %s20, 1
        %s318 = smul.addr %s317, 8
        %s319 = scalar_lea.vmem %s0, %s318
        %p320 = scmp.lt.s32.totalorder %s20, 1
        %s321 = scalar_select %p320, %s20, 1
        %s322 = smul.addr %s321, 8
        %s323 = scalar_lea.vmem %s7, %s322
        %v325 = vld [vmem:[%s319] sm:$0x7f]
        %v326 = vld [vmem:[#allocation3] sm:$0xff]
        %v327 = vld [vmem:[#allocation3 + $0x8] sm:$0xff]
        %v328 = vld [vmem:[#allocation3 + $0x10] sm:$0xff]
        %v329 = vld [vmem:[#allocation3 + $0x18] sm:$0xff]
        %v330 = vld [vmem:[#allocation3 + $0x20] sm:$0xff]
        %v331 = vld [vmem:[#allocation3 + $0x28] sm:$0xff]
        %v332 = vld [vmem:[#allocation3 + $0x30] sm:$0xff]
        %v333 = vld [vmem:[#allocation3 + $0x38] sm:$0xff]
        %v334 = vld [vmem:[%s319 + $0x1] sm:$0x7f]
        %v335 = vld [vmem:[#allocation3 + $0x40] sm:$0xff]
        %v336 = vld [vmem:[#allocation3 + $0x48] sm:$0xff]
        %v337 = vld [vmem:[#allocation3 + $0x50] sm:$0xff]
        %v338 = vld [vmem:[#allocation3 + $0x58] sm:$0xff]
        %v339 = vld [vmem:[#allocation3 + $0x60] sm:$0xff]
        %v340 = vld [vmem:[#allocation3 + $0x68] sm:$0xff]
        %v341 = vld [vmem:[#allocation3 + $0x70] sm:$0xff]
        %v342 = vld [vmem:[#allocation3 + $0x78] sm:$0xff]
        %vm343 = vcmask 261120
        %v345 = vsel %vm343, %v334, 0
        %347 = vmatpush.msra.mxu0 0.0
        %348 = vmatpush.msra.mxu0 0.0
        %349 = vmatpush.msra.mxu0 0.0
        %350 = vmatpush.msra.mxu0 0.0
        %351 = vmatpush.msra.mxu0 0.0
        %352 = vmatpush.msra.mxu0 0.0
        %353 = vmatpush.msra.mxu0 0.0
        %354 = vmatpush.msra.mxu0 0.0
        %355 = vmatpush.msra.mxu0 0.0
        %356 = vmatpush.msra.mxu0 0.0
        %357 = vmatpush.msra.mxu0 0.0
        %358 = vmatpush.msra.mxu0 0.0
        %359 = vmatpush.msra.mxu0 %v341
        %360 = vmatpush.msra.mxu0 %v339
        %361 = vmatpush.msra.mxu0 %v337
        %362 = vmatpush.msra.mxu0 %v335
        %363 = vmatmul.f32.gmra.mxu0 %v345
        %v364 = vpop.f32.mrf.mxu0
        %v365 = vadd.f32 0.0, %v364
        %366 = vdwg.mxu0
        %367 = vmatpush.msra.mxu0 0.0
        %368 = vmatpush.msra.mxu0 0.0
        %369 = vmatpush.msra.mxu0 0.0
        %370 = vmatpush.msra.mxu0 0.0
        %371 = vmatpush.msra.mxu0 0.0
        %372 = vmatpush.msra.mxu0 0.0
        %373 = vmatpush.msra.mxu0 0.0
        %374 = vmatpush.msra.mxu0 0.0
        %375 = vmatpush.msra.mxu0 0.0
        %376 = vmatpush.msra.mxu0 0.0
        %377 = vmatpush.msra.mxu0 0.0
        %378 = vmatpush.msra.mxu0 0.0
        %379 = vmatpush.msra.mxu0 %v342
        %380 = vmatpush.msra.mxu0 %v340
        %381 = vmatpush.msra.mxu0 %v338
        %382 = vmatpush.msra.mxu0 %v336
        %383 = vmatmul.f32.gmra.mxu0 %v345
        %v384 = vpop.f32.mrf.mxu0
        %v385 = vadd.f32 0.0, %v384
        %386 = vdwg.mxu0
        %v388 = vsel %vm343, %v325, 0
        %390 = vmatpush.msra.mxu0 0.0
        %391 = vmatpush.msra.mxu0 0.0
        %392 = vmatpush.msra.mxu0 0.0
        %393 = vmatpush.msra.mxu0 0.0
        %394 = vmatpush.msra.mxu0 0.0
        %395 = vmatpush.msra.mxu0 0.0
        %396 = vmatpush.msra.mxu0 0.0
        %397 = vmatpush.msra.mxu0 0.0
        %398 = vmatpush.msra.mxu0 0.0
        %399 = vmatpush.msra.mxu0 0.0
        %400 = vmatpush.msra.mxu0 0.0
        %401 = vmatpush.msra.mxu0 0.0
        %402 = vmatpush.msra.mxu0 %v332
        %403 = vmatpush.msra.mxu0 %v330
        %404 = vmatpush.msra.mxu0 %v328
        %405 = vmatpush.msra.mxu0 %v326
        %406 = vmatmul.f32.gmra.mxu0 %v388
        %v407 = vpop.f32.mrf.mxu0
        %v408 = vadd.f32 %v365, %v407
        %409 = vdwg.mxu0
        %410 = vmatpush.msra.mxu0 0.0
        %411 = vmatpush.msra.mxu0 0.0
        %412 = vmatpush.msra.mxu0 0.0
        %413 = vmatpush.msra.mxu0 0.0
        %414 = vmatpush.msra.mxu0 0.0
        %415 = vmatpush.msra.mxu0 0.0
        %416 = vmatpush.msra.mxu0 0.0
        %417 = vmatpush.msra.mxu0 0.0
        %418 = vmatpush.msra.mxu0 0.0
        %419 = vmatpush.msra.mxu0 0.0
        %420 = vmatpush.msra.mxu0 0.0
        %421 = vmatpush.msra.mxu0 0.0
        %422 = vmatpush.msra.mxu0 %v333
        %423 = vmatpush.msra.mxu0 %v331
        %424 = vmatpush.msra.mxu0 %v329
        %425 = vmatpush.msra.mxu0 %v327
        %426 = vmatmul.f32.gmra.mxu0 %v388
        %v427 = vpop.f32.mrf.mxu0
        %v428 = vadd.f32 %v385, %v427
        %429 = vdwg.mxu0
        %v430 = vld [vmem:[%s2] sm:$0x3]
        %v432 = vperm.slane %v430, 0
        %v433 = vperm.slane %v430, 1
        %v436 = vadd.f32 %v408, %v432
        %v437 = vadd.f32 %v428, %v433
        %v438 = vmax.f32 %v436, 0.0
        %v439 = vmax.f32 %v437, 0.0
        %v440 = vpack.c.bf16 %v439, %v438
        %vm441 = vcmask 1043456
        %vm442 = vsmask.f32 3328
        %vm443 = vmand %vm441, %vm442
        %vm444 = vcmask 785412
        %vm445 = vsmask.f32 7424
        %vm446 = vmand %vm444, %vm445
        %vm447 = vmor %vm446, %vm443
        %v448 = vld [vmem:[#allocation2] sm:$0xff]
        %v449 = vsel %vm447, %v440, %v448
        %450 = vst [vmem:[#allocation2] sm:$0xff] %v449
        %v451 = vld [vmem:[%s6] sm:$0x1]
        %v453 = vperm.slane %v451, 0
        %v455 = vadd.f32 %v453, 0.0
        %v456 = vld [vmem:[#allocation5] sm:$0xf]
        %v457 = vld [vmem:[#allocation5 + $0x4] sm:$0xf]
        %v458 = vld [vmem:[#allocation5 + $0x8] sm:$0xf]
        %v459 = vld [vmem:[#allocation5 + $0xc] sm:$0xf]
        %v460 = vld [vmem:[#allocation2] sm:$0x7]
        %v461 = vld [vmem:[#allocation5 + $0x10] sm:$0xf]
        %v462 = vld [vmem:[#allocation5 + $0x14] sm:$0xf]
        %v463 = vld [vmem:[#allocation5 + $0x18] sm:$0xf]
        %v464 = vld [vmem:[#allocation5 + $0x1c] sm:$0xf]
        %v466 = vunpack.c.l.b16 %v460
        %v467 = vpack.c.b16 %v466, %v466
        %468 = vrot.lane.b32.xlu0 %v467, 96
        %v469 = vpop.permute.xlu0 %468
        %v474 = vunpack.c.l.b16 %v461
        %v475 = vunpack.c.l.b16 %v462
        %v476 = vunpack.c.l.b16 %v463
        %v477 = vunpack.c.l.b16 %v464
        %v478 = vpack.c.b16 %v475, %v474
        %v479 = vpack.c.b16 %v477, %v476
        %v483 = vsel %vm343, %v469, 0
        %485 = vmatpush.bf16.msra.mxu0 0
        %486 = vmatpush.bf16.msra.mxu0 0
        %487 = vmatpush.bf16.msra.mxu0 0
        %488 = vmatpush.bf16.msra.mxu0 0
        %489 = vmatpush.bf16.msra.mxu0 0
        %490 = vmatpush.bf16.msra.mxu0 0
        %491 = vmatpush.bf16.msra.mxu0 %v479
        %492 = vmatpush.bf16.msra.mxu0 %v478
        %493 = vmatmul.bf16.gmra.mxu0 %v483
        %v494 = vpop.f32.mrf.mxu0
        %v495 = vadd.f32 0.0, %v494
        %v496 = vpop.f32.mrf.mxu0
        %497 = vdwg.mxu0
        %v502 = vunpack.c.l.b16 %v456
        %v503 = vunpack.c.l.b16 %v457
        %v504 = vunpack.c.l.b16 %v458
        %v505 = vunpack.c.l.b16 %v459
        %v506 = vpack.c.b16 %v503, %v502
        %v507 = vpack.c.b16 %v505, %v504
        %v511 = vsel %vm343, %v460, 0
        %513 = vmatpush.bf16.msra.mxu0 0
        %514 = vmatpush.bf16.msra.mxu0 0
        %515 = vmatpush.bf16.msra.mxu0 0
        %516 = vmatpush.bf16.msra.mxu0 0
        %517 = vmatpush.bf16.msra.mxu0 0
        %518 = vmatpush.bf16.msra.mxu0 0
        %519 = vmatpush.bf16.msra.mxu0 %v507
        %520 = vmatpush.bf16.msra.mxu0 %v506
        %521 = vmatmul.bf16.gmra.mxu0 %v511
        %v522 = vpop.f32.mrf.mxu0
        %v523 = vadd.f32 %v495, %v522
        %v524 = vpop.f32.mrf.mxu0
        %525 = vdwg.mxu0
        %v526 = vld [vmem:[#allocation5 + $0x20] sm:$0xf]
        %v527 = vld [vmem:[#allocation5 + $0x24] sm:$0xf]
        %v528 = vld [vmem:[#allocation5 + $0x28] sm:$0xf]
        %v529 = vld [vmem:[#allocation5 + $0x2c] sm:$0xf]
        %530 = vrot.lane.b32.xlu0 %v467, 64
        %v531 = vpop.permute.xlu0 %530
        %v536 = vunpack.c.l.b16 %v526
        %v537 = vunpack.c.l.b16 %v527
        %v538 = vunpack.c.l.b16 %v528
        %v539 = vunpack.c.l.b16 %v529
        %v540 = vpack.c.b16 %v537, %v536
        %v541 = vpack.c.b16 %v539, %v538
        %v545 = vsel %vm343, %v531, 0
        %547 = vmatpush.bf16.msra.mxu0 0
        %548 = vmatpush.bf16.msra.mxu0 0
        %549 = vmatpush.bf16.msra.mxu0 0
        %550 = vmatpush.bf16.msra.mxu0 0
        %551 = vmatpush.bf16.msra.mxu0 0
        %552 = vmatpush.bf16.msra.mxu0 0
        %553 = vmatpush.bf16.msra.mxu0 %v541
        %554 = vmatpush.bf16.msra.mxu0 %v540
        %555 = vmatmul.bf16.gmra.mxu0 %v545
        %v556 = vpop.f32.mrf.mxu0
        %v557 = vadd.f32 0.0, %v556
        %v558 = vpop.f32.mrf.mxu0
        %559 = vdwg.mxu0
        %v560 = vadd.f32 %v523, %v557
        %v561 = vld [vmem:[#allocation5 + $0x30] sm:$0xf]
        %v562 = vld [vmem:[#allocation5 + $0x34] sm:$0xf]
        %v563 = vld [vmem:[#allocation5 + $0x38] sm:$0xf]
        %v564 = vld [vmem:[#allocation5 + $0x3c] sm:$0xf]
        %v566 = vshrl.u32 %v467, 16
        %v568 = vshll.u32 %v467, 16
        %v570 = vrot.slane %v568, 1
        %v571 = vor.u32 %v566, %v570
        %v576 = vunpack.c.l.b16 %v561
        %v577 = vunpack.c.l.b16 %v562
        %v578 = vunpack.c.l.b16 %v563
        %v579 = vunpack.c.l.b16 %v564
        %v580 = vpack.c.b16 %v577, %v576
        %v581 = vpack.c.b16 %v579, %v578
        %v585 = vsel %vm343, %v571, 0
        %587 = vmatpush.bf16.msra.mxu0 0
        %588 = vmatpush.bf16.msra.mxu0 0
        %589 = vmatpush.bf16.msra.mxu0 0
        %590 = vmatpush.bf16.msra.mxu0 0
        %591 = vmatpush.bf16.msra.mxu0 0
        %592 = vmatpush.bf16.msra.mxu0 0
        %593 = vmatpush.bf16.msra.mxu0 %v581
        %594 = vmatpush.bf16.msra.mxu0 %v580
        %595 = vmatmul.bf16.gmra.mxu0 %v585
        %v596 = vpop.f32.mrf.mxu0
        %v597 = vadd.f32 0.0, %v596
        %v598 = vpop.f32.mrf.mxu0
        %599 = vdwg.mxu0
        %v600 = vadd.f32 %v560, %v597
        %v601 = vld [vmem:[#allocation5 + $0x40] sm:$0xf]
        %v602 = vld [vmem:[#allocation5 + $0x44] sm:$0xf]
        %v603 = vld [vmem:[#allocation5 + $0x48] sm:$0xf]
        %v604 = vld [vmem:[#allocation5 + $0x4c] sm:$0xf]
        %605 = vrot.lane.b32.xlu0 %v571, 96
        %v606 = vpop.permute.xlu0 %605
        %v611 = vunpack.c.l.b16 %v601
        %v612 = vunpack.c.l.b16 %v602
        %v613 = vunpack.c.l.b16 %v603
        %v614 = vunpack.c.l.b16 %v604
        %v615 = vpack.c.b16 %v612, %v611
        %v616 = vpack.c.b16 %v614, %v613
        %v620 = vsel %vm343, %v606, 0
        %622 = vmatpush.bf16.msra.mxu0 0
        %623 = vmatpush.bf16.msra.mxu0 0
        %624 = vmatpush.bf16.msra.mxu0 0
        %625 = vmatpush.bf16.msra.mxu0 0
        %626 = vmatpush.bf16.msra.mxu0 0
        %627 = vmatpush.bf16.msra.mxu0 0
        %628 = vmatpush.bf16.msra.mxu0 %v616
        %629 = vmatpush.bf16.msra.mxu0 %v615
        %630 = vmatmul.bf16.gmra.mxu0 %v620
        %v631 = vpop.f32.mrf.mxu0
        %v632 = vadd.f32 0.0, %v631
        %v633 = vpop.f32.mrf.mxu0
        %634 = vdwg.mxu0
        %v635 = vadd.f32 %v600, %v632
        %v636 = vld [vmem:[#allocation5 + $0x50] sm:$0xf]
        %v637 = vld [vmem:[#allocation5 + $0x54] sm:$0xf]
        %v638 = vld [vmem:[#allocation5 + $0x58] sm:$0xf]
        %v639 = vld [vmem:[#allocation5 + $0x5c] sm:$0xf]
        %640 = vrot.lane.b32.xlu0 %v571, 64
        %v641 = vpop.permute.xlu0 %640
        %v646 = vunpack.c.l.b16 %v636
        %v647 = vunpack.c.l.b16 %v637
        %v648 = vunpack.c.l.b16 %v638
        %v649 = vunpack.c.l.b16 %v639
        %v650 = vpack.c.b16 %v647, %v646
        %v651 = vpack.c.b16 %v649, %v648
        %v655 = vsel %vm343, %v641, 0
        %657 = vmatpush.bf16.msra.mxu0 0
        %658 = vmatpush.bf16.msra.mxu0 0
        %659 = vmatpush.bf16.msra.mxu0 0
        %660 = vmatpush.bf16.msra.mxu0 0
        %661 = vmatpush.bf16.msra.mxu0 0
        %662 = vmatpush.bf16.msra.mxu0 0
        %663 = vmatpush.bf16.msra.mxu0 %v651
        %664 = vmatpush.bf16.msra.mxu0 %v650
        %665 = vmatmul.bf16.gmra.mxu0 %v655
        %v666 = vpop.f32.mrf.mxu0
        %v667 = vadd.f32 0.0, %v666
        %v668 = vpop.f32.mrf.mxu0
        %669 = vdwg.mxu0
        %v670 = vadd.f32 %v635, %v667
        %v671 = vld [vmem:[#allocation5 + $0x60] sm:$0xf]
        %v672 = vld [vmem:[#allocation5 + $0x64] sm:$0xf]
        %v673 = vld [vmem:[#allocation5 + $0x68] sm:$0xf]
        %v674 = vld [vmem:[#allocation5 + $0x6c] sm:$0xf]
        %v675 = vld [vmem:[#allocation2] sm:$0xe]
        %v677 = vunpack.c.l.b16 %v675
        %v678 = vpack.c.b16 %v677, %v677
        %v679 = vrot.slane %v678, 1
        %v684 = vunpack.c.l.b16 %v671
        %v685 = vunpack.c.l.b16 %v672
        %v686 = vunpack.c.l.b16 %v673
        %v687 = vunpack.c.l.b16 %v674
        %v688 = vpack.c.b16 %v685, %v684
        %v689 = vpack.c.b16 %v687, %v686
        %v693 = vsel %vm343, %v679, 0
        %695 = vmatpush.bf16.msra.mxu0 0
        %696 = vmatpush.bf16.msra.mxu0 0
        %697 = vmatpush.bf16.msra.mxu0 0
        %698 = vmatpush.bf16.msra.mxu0 0
        %699 = vmatpush.bf16.msra.mxu0 0
        %700 = vmatpush.bf16.msra.mxu0 0
        %701 = vmatpush.bf16.msra.mxu0 %v689
        %702 = vmatpush.bf16.msra.mxu0 %v688
        %703 = vmatmul.bf16.gmra.mxu0 %v693
        %v704 = vpop.f32.mrf.mxu0
        %v705 = vadd.f32 0.0, %v704
        %v706 = vpop.f32.mrf.mxu0
        %707 = vdwg.mxu0
        %v708 = vadd.f32 %v670, %v705
        %v709 = vld [vmem:[#allocation5 + $0x70] sm:$0xf]
        %v710 = vld [vmem:[#allocation5 + $0x74] sm:$0xf]
        %v711 = vld [vmem:[#allocation5 + $0x78] sm:$0xf]
        %v712 = vld [vmem:[#allocation5 + $0x7c] sm:$0xf]
        %713 = vrot.lane.b32.xlu0 %v679, 96
        %v714 = vpop.permute.xlu0 %713
        %v719 = vunpack.c.l.b16 %v709
        %v720 = vunpack.c.l.b16 %v710
        %v721 = vunpack.c.l.b16 %v711
        %v722 = vunpack.c.l.b16 %v712
        %v723 = vpack.c.b16 %v720, %v719
        %v724 = vpack.c.b16 %v722, %v721
        %v728 = vsel %vm343, %v714, 0
        %730 = vmatpush.bf16.msra.mxu0 0
        %731 = vmatpush.bf16.msra.mxu0 0
        %732 = vmatpush.bf16.msra.mxu0 0
        %733 = vmatpush.bf16.msra.mxu0 0
        %734 = vmatpush.bf16.msra.mxu0 0
        %735 = vmatpush.bf16.msra.mxu0 0
        %736 = vmatpush.bf16.msra.mxu0 %v724
        %737 = vmatpush.bf16.msra.mxu0 %v723
        %738 = vmatmul.bf16.gmra.mxu0 %v728
        %v739 = vpop.f32.mrf.mxu0
        %v740 = vadd.f32 0.0, %v739
        %v741 = vpop.f32.mrf.mxu0
        %742 = vdwg.mxu0
        %v743 = vadd.f32 %v708, %v740
        %v744 = vld [vmem:[#allocation5 + $0x80] sm:$0xf]
        %v745 = vld [vmem:[#allocation5 + $0x84] sm:$0xf]
        %v746 = vld [vmem:[#allocation5 + $0x88] sm:$0xf]
        %v747 = vld [vmem:[#allocation5 + $0x8c] sm:$0xf]
        %748 = vrot.lane.b32.xlu0 %v679, 64
        %v749 = vpop.permute.xlu0 %748
        %v754 = vunpack.c.l.b16 %v744
        %v755 = vunpack.c.l.b16 %v745
        %v756 = vunpack.c.l.b16 %v746
        %v757 = vunpack.c.l.b16 %v747
        %v758 = vpack.c.b16 %v755, %v754
        %v759 = vpack.c.b16 %v757, %v756
        %v763 = vsel %vm343, %v749, 0
        %765 = vmatpush.bf16.msra.mxu0 0
        %766 = vmatpush.bf16.msra.mxu0 0
        %767 = vmatpush.bf16.msra.mxu0 0
        %768 = vmatpush.bf16.msra.mxu0 0
        %769 = vmatpush.bf16.msra.mxu0 0
        %770 = vmatpush.bf16.msra.mxu0 0
        %771 = vmatpush.bf16.msra.mxu0 %v759
        %772 = vmatpush.bf16.msra.mxu0 %v758
        %773 = vmatmul.bf16.gmra.mxu0 %v763
        %v774 = vpop.f32.mrf.mxu0
        %v775 = vadd.f32 0.0, %v774
        %v776 = vpop.f32.mrf.mxu0
        %777 = vdwg.mxu0
        %v778 = vadd.f32 %v743, %v775
        %v779 = vld [vmem:[%s4] sm:$0x1]
        %v781 = vperm.slane %v779, 0
        %v783 = vadd.f32 %v778, %v781
        %v784 = vmax.f32 %v783, 0.0
        %v785 = vpack.c.bf16 %v784, %v784
        %v786 = vld [vmem:[#allocation7] sm:$0xf]
        %v787 = vld [vmem:[#allocation7 + $0x4] sm:$0xf]
        %v788 = vld [vmem:[#allocation7 + $0x8] sm:$0xf]
        %v789 = vld [vmem:[#allocation7 + $0xc] sm:$0xf]
        %v794 = vunpack.c.l.b16 %v786
        %v795 = vunpack.c.l.b16 %v787
        %v796 = vunpack.c.l.b16 %v788
        %v797 = vunpack.c.l.b16 %v789
        %v798 = vpack.c.b16 %v795, %v794
        %v799 = vpack.c.b16 %v797, %v796
        %v803 = vsel %vm343, %v785, 0
        %805 = vmatpush.bf16.msra.mxu0 0
        %806 = vmatpush.bf16.msra.mxu0 0
        %807 = vmatpush.bf16.msra.mxu0 0
        %808 = vmatpush.bf16.msra.mxu0 0
        %809 = vmatpush.bf16.msra.mxu0 0
        %810 = vmatpush.bf16.msra.mxu0 0
        %811 = vmatpush.bf16.msra.mxu0 %v799
        %812 = vmatpush.bf16.msra.mxu0 %v798
        %813 = vmatmul.bf16.gmra.mxu0 %v803
        %v814 = vpop.f32.mrf.mxu0
        %v815 = vadd.f32 0.0, %v814
        %v816 = vpop.f32.mrf.mxu0
        %817 = vdwg.mxu0
        %v818 = vadd.f32 %v455, %v815
        %819 = vmatpush.bf16.msra.mxu0 0
        %820 = vmatpush.bf16.msra.mxu0 0
        %821 = vmatpush.bf16.msra.mxu0 0
        %822 = vmatpush.bf16.msra.mxu0 0
        %823 = vmatpush.bf16.msra.mxu0 0
        %824 = vmatpush.bf16.msra.mxu0 0
        %825 = vmatpush.bf16.msra.mxu0 %v479
        %826 = vmatpush.bf16.msra.mxu0 %v478
        %827 = vmatmul.bf16.gmra.mxu0 %v545
        %v828 = vpop.f32.mrf.mxu0
        %v829 = vadd.f32 0.0, %v828
        %v830 = vpop.f32.mrf.mxu0
        %831 = vdwg.mxu0
        %832 = vmatpush.bf16.msra.mxu0 0
        %833 = vmatpush.bf16.msra.mxu0 0
        %834 = vmatpush.bf16.msra.mxu0 0
        %835 = vmatpush.bf16.msra.mxu0 0
        %836 = vmatpush.bf16.msra.mxu0 0
        %837 = vmatpush.bf16.msra.mxu0 0
        %838 = vmatpush.bf16.msra.mxu0 %v507
        %839 = vmatpush.bf16.msra.mxu0 %v506
        %840 = vmatmul.bf16.gmra.mxu0 %v483
        %v841 = vpop.f32.mrf.mxu0
        %v842 = vadd.f32 %v829, %v841
        %v843 = vpop.f32.mrf.mxu0
        %844 = vdwg.mxu0
        %845 = vrot.lane.b32.xlu0 %v467, 32
        %v846 = vpop.permute.xlu0 %845
        %v848 = vsel %vm343, %v846, 0
        %850 = vmatpush.bf16.msra.mxu0 0
        %851 = vmatpush.bf16.msra.mxu0 0
        %852 = vmatpush.bf16.msra.mxu0 0
        %853 = vmatpush.bf16.msra.mxu0 0
        %854 = vmatpush.bf16.msra.mxu0 0
        %855 = vmatpush.bf16.msra.mxu0 0
        %856 = vmatpush.bf16.msra.mxu0 %v541
        %857 = vmatpush.bf16.msra.mxu0 %v540
        %858 = vmatmul.bf16.gmra.mxu0 %v848
        %v859 = vpop.f32.mrf.mxu0
        %v860 = vadd.f32 0.0, %v859
        %v861 = vpop.f32.mrf.mxu0
        %862 = vdwg.mxu0
        %v863 = vadd.f32 %v842, %v860
        %864 = vmatpush.bf16.msra.mxu0 0
        %865 = vmatpush.bf16.msra.mxu0 0
        %866 = vmatpush.bf16.msra.mxu0 0
        %867 = vmatpush.bf16.msra.mxu0 0
        %868 = vmatpush.bf16.msra.mxu0 0
        %869 = vmatpush.bf16.msra.mxu0 0
        %870 = vmatpush.bf16.msra.mxu0 %v581
        %871 = vmatpush.bf16.msra.mxu0 %v580
        %872 = vmatmul.bf16.gmra.mxu0 %v620
        %v873 = vpop.f32.mrf.mxu0
        %v874 = vadd.f32 0.0, %v873
        %v875 = vpop.f32.mrf.mxu0
        %876 = vdwg.mxu0
        %v877 = vadd.f32 %v863, %v874
        %878 = vmatpush.bf16.msra.mxu0 0
        %879 = vmatpush.bf16.msra.mxu0 0
        %880 = vmatpush.bf16.msra.mxu0 0
        %881 = vmatpush.bf16.msra.mxu0 0
        %882 = vmatpush.bf16.msra.mxu0 0
        %883 = vmatpush.bf16.msra.mxu0 0
        %884 = vmatpush.bf16.msra.mxu0 %v616
        %885 = vmatpush.bf16.msra.mxu0 %v615
        %886 = vmatmul.bf16.gmra.mxu0 %v655
        %v887 = vpop.f32.mrf.mxu0
        %v888 = vadd.f32 0.0, %v887
        %v889 = vpop.f32.mrf.mxu0
        %890 = vdwg.mxu0
        %v891 = vadd.f32 %v877, %v888
        %892 = vrot.lane.b32.xlu0 %v571, 32
        %v893 = vpop.permute.xlu0 %892
        %v895 = vsel %vm343, %v893, 0
        %897 = vmatpush.bf16.msra.mxu0 0
        %898 = vmatpush.bf16.msra.mxu0 0
        %899 = vmatpush.bf16.msra.mxu0 0
        %900 = vmatpush.bf16.msra.mxu0 0
        %901 = vmatpush.bf16.msra.mxu0 0
        %902 = vmatpush.bf16.msra.mxu0 0
        %903 = vmatpush.bf16.msra.mxu0 %v651
        %904 = vmatpush.bf16.msra.mxu0 %v650
        %905 = vmatmul.bf16.gmra.mxu0 %v895
        %v906 = vpop.f32.mrf.mxu0
        %v907 = vadd.f32 0.0, %v906
        %v908 = vpop.f32.mrf.mxu0
        %909 = vdwg.mxu0
        %v910 = vadd.f32 %v891, %v907
        %911 = vmatpush.bf16.msra.mxu0 0
        %912 = vmatpush.bf16.msra.mxu0 0
        %913 = vmatpush.bf16.msra.mxu0 0
        %914 = vmatpush.bf16.msra.mxu0 0
        %915 = vmatpush.bf16.msra.mxu0 0
        %916 = vmatpush.bf16.msra.mxu0 0
        %917 = vmatpush.bf16.msra.mxu0 %v689
        %918 = vmatpush.bf16.msra.mxu0 %v688
        %919 = vmatmul.bf16.gmra.mxu0 %v728
        %v920 = vpop.f32.mrf.mxu0
        %v921 = vadd.f32 0.0, %v920
        %v922 = vpop.f32.mrf.mxu0
        %923 = vdwg.mxu0
        %v924 = vadd.f32 %v910, %v921
        %925 = vmatpush.bf16.msra.mxu0 0
        %926 = vmatpush.bf16.msra.mxu0 0
        %927 = vmatpush.bf16.msra.mxu0 0
        %928 = vmatpush.bf16.msra.mxu0 0
        %929 = vmatpush.bf16.msra.mxu0 0
        %930 = vmatpush.bf16.msra.mxu0 0
        %931 = vmatpush.bf16.msra.mxu0 %v724
        %932 = vmatpush.bf16.msra.mxu0 %v723
        %933 = vmatmul.bf16.gmra.mxu0 %v763
        %v934 = vpop.f32.mrf.mxu0
        %v935 = vadd.f32 0.0, %v934
        %v936 = vpop.f32.mrf.mxu0
        %937 = vdwg.mxu0
        %v938 = vadd.f32 %v924, %v935
        %939 = vrot.lane.b32.xlu0 %v679, 32
        %v940 = vpop.permute.xlu0 %939
        %v942 = vsel %vm343, %v940, 0
        %944 = vmatpush.bf16.msra.mxu0 0
        %945 = vmatpush.bf16.msra.mxu0 0
        %946 = vmatpush.bf16.msra.mxu0 0
        %947 = vmatpush.bf16.msra.mxu0 0
        %948 = vmatpush.bf16.msra.mxu0 0
        %949 = vmatpush.bf16.msra.mxu0 0
        %950 = vmatpush.bf16.msra.mxu0 %v759
        %951 = vmatpush.bf16.msra.mxu0 %v758
        %952 = vmatmul.bf16.gmra.mxu0 %v942
        %v953 = vpop.f32.mrf.mxu0
        %v954 = vadd.f32 0.0, %v953
        %v955 = vpop.f32.mrf.mxu0
        %956 = vdwg.mxu0
        %v957 = vadd.f32 %v938, %v954
        %v958 = vadd.f32 %v957, %v781
        %v959 = vmax.f32 %v958, 0.0
        %v960 = vpack.c.bf16 %v959, %v959
        %v961 = vld [vmem:[#allocation7 + $0x10] sm:$0xf]
        %v962 = vld [vmem:[#allocation7 + $0x14] sm:$0xf]
        %v963 = vld [vmem:[#allocation7 + $0x18] sm:$0xf]
        %v964 = vld [vmem:[#allocation7 + $0x1c] sm:$0xf]
        %v969 = vunpack.c.l.b16 %v961
        %v970 = vunpack.c.l.b16 %v962
        %v971 = vunpack.c.l.b16 %v963
        %v972 = vunpack.c.l.b16 %v964
        %v973 = vpack.c.b16 %v970, %v969
        %v974 = vpack.c.b16 %v972, %v971
        %v978 = vsel %vm343, %v960, 0
        %980 = vmatpush.bf16.msra.mxu0 0
        %981 = vmatpush.bf16.msra.mxu0 0
        %982 = vmatpush.bf16.msra.mxu0 0
        %983 = vmatpush.bf16.msra.mxu0 0
        %984 = vmatpush.bf16.msra.mxu0 0
        %985 = vmatpush.bf16.msra.mxu0 0
        %986 = vmatpush.bf16.msra.mxu0 %v974
        %987 = vmatpush.bf16.msra.mxu0 %v973
        %988 = vmatmul.bf16.gmra.mxu0 %v978
        %v989 = vpop.f32.mrf.mxu0
        %v990 = vadd.f32 0.0, %v989
        %v991 = vpop.f32.mrf.mxu0
        %992 = vdwg.mxu0
        %v993 = vadd.f32 %v818, %v990
        %994 = vmatpush.bf16.msra.mxu0 0
        %995 = vmatpush.bf16.msra.mxu0 0
        %996 = vmatpush.bf16.msra.mxu0 0
        %997 = vmatpush.bf16.msra.mxu0 0
        %998 = vmatpush.bf16.msra.mxu0 0
        %999 = vmatpush.bf16.msra.mxu0 0
        %1000 = vmatpush.bf16.msra.mxu0 %v479
        %1001 = vmatpush.bf16.msra.mxu0 %v478
        %1002 = vmatmul.bf16.gmra.mxu0 %v848
        %v1003 = vpop.f32.mrf.mxu0
        %v1004 = vadd.f32 0.0, %v1003
        %v1005 = vpop.f32.mrf.mxu0
        %1006 = vdwg.mxu0
        %1007 = vmatpush.bf16.msra.mxu0 0
        %1008 = vmatpush.bf16.msra.mxu0 0
        %1009 = vmatpush.bf16.msra.mxu0 0
        %1010 = vmatpush.bf16.msra.mxu0 0
        %1011 = vmatpush.bf16.msra.mxu0 0
        %1012 = vmatpush.bf16.msra.mxu0 0
        %1013 = vmatpush.bf16.msra.mxu0 %v507
        %1014 = vmatpush.bf16.msra.mxu0 %v506
        %1015 = vmatmul.bf16.gmra.mxu0 %v545
        %v1016 = vpop.f32.mrf.mxu0
        %v1017 = vadd.f32 %v1004, %v1016
        %v1018 = vpop.f32.mrf.mxu0
        %1019 = vdwg.mxu0
        %v1020 = vld [vmem:[#allocation2 + $0x4] sm:$0x7]
        %v1022 = vsel %vm343, %v1020, 0
        %1024 = vmatpush.bf16.msra.mxu0 0
        %1025 = vmatpush.bf16.msra.mxu0 0
        %1026 = vmatpush.bf16.msra.mxu0 0
        %1027 = vmatpush.bf16.msra.mxu0 0
        %1028 = vmatpush.bf16.msra.mxu0 0
        %1029 = vmatpush.bf16.msra.mxu0 0
        %1030 = vmatpush.bf16.msra.mxu0 %v541
        %1031 = vmatpush.bf16.msra.mxu0 %v540
        %1032 = vmatmul.bf16.gmra.mxu0 %v1022
        %v1033 = vpop.f32.mrf.mxu0
        %v1034 = vadd.f32 0.0, %v1033
        %v1035 = vpop.f32.mrf.mxu0
        %1036 = vdwg.mxu0
        %v1037 = vadd.f32 %v1017, %v1034
        %1038 = vmatpush.bf16.msra.mxu0 0
        %1039 = vmatpush.bf16.msra.mxu0 0
        %1040 = vmatpush.bf16.msra.mxu0 0
        %1041 = vmatpush.bf16.msra.mxu0 0
        %1042 = vmatpush.bf16.msra.mxu0 0
        %1043 = vmatpush.bf16.msra.mxu0 0
        %1044 = vmatpush.bf16.msra.mxu0 %v581
        %1045 = vmatpush.bf16.msra.mxu0 %v580
        %1046 = vmatmul.bf16.gmra.mxu0 %v655
        %v1047 = vpop.f32.mrf.mxu0
        %v1048 = vadd.f32 0.0, %v1047
        %v1049 = vpop.f32.mrf.mxu0
        %1050 = vdwg.mxu0
        %v1051 = vadd.f32 %v1037, %v1048
        %1052 = vmatpush.bf16.msra.mxu0 0
        %1053 = vmatpush.bf16.msra.mxu0 0
        %1054 = vmatpush.bf16.msra.mxu0 0
        %1055 = vmatpush.bf16.msra.mxu0 0
        %1056 = vmatpush.bf16.msra.mxu0 0
        %1057 = vmatpush.bf16.msra.mxu0 0
        %1058 = vmatpush.bf16.msra.mxu0 %v616
        %1059 = vmatpush.bf16.msra.mxu0 %v615
        %1060 = vmatmul.bf16.gmra.mxu0 %v895
        %v1061 = vpop.f32.mrf.mxu0
        %v1062 = vadd.f32 0.0, %v1061
        %v1063 = vpop.f32.mrf.mxu0
        %1064 = vdwg.mxu0
        %v1065 = vadd.f32 %v1051, %v1062
        %v1067 = vunpack.c.l.b16 %v1020
        %v1068 = vpack.c.b16 %v1067, %v1067
        %v1070 = vshrl.u32 %v1068, 16
        %v1072 = vshll.u32 %v1068, 16
        %v1074 = vrot.slane %v1072, 1
        %v1075 = vor.u32 %v1070, %v1074
        %v1077 = vsel %vm343, %v1075, 0
        %1079 = vmatpush.bf16.msra.mxu0 0
        %1080 = vmatpush.bf16.msra.mxu0 0
        %1081 = vmatpush.bf16.msra.mxu0 0
        %1082 = vmatpush.bf16.msra.mxu0 0
        %1083 = vmatpush.bf16.msra.mxu0 0
        %1084 = vmatpush.bf16.msra.mxu0 0
        %1085 = vmatpush.bf16.msra.mxu0 %v651
        %1086 = vmatpush.bf16.msra.mxu0 %v650
        %1087 = vmatmul.bf16.gmra.mxu0 %v1077
        %v1088 = vpop.f32.mrf.mxu0
        %v1089 = vadd.f32 0.0, %v1088
        %v1090 = vpop.f32.mrf.mxu0
        %1091 = vdwg.mxu0
        %v1092 = vadd.f32 %v1065, %v1089
        %1093 = vmatpush.bf16.msra.mxu0 0
        %1094 = vmatpush.bf16.msra.mxu0 0
        %1095 = vmatpush.bf16.msra.mxu0 0
        %1096 = vmatpush.bf16.msra.mxu0 0
        %1097 = vmatpush.bf16.msra.mxu0 0
        %1098 = vmatpush.bf16.msra.mxu0 0
        %1099 = vmatpush.bf16.msra.mxu0 %v689
        %1100 = vmatpush.bf16.msra.mxu0 %v688
        %1101 = vmatmul.bf16.gmra.mxu0 %v763
        %v1102 = vpop.f32.mrf.mxu0
        %v1103 = vadd.f32 0.0, %v1102
        %v1104 = vpop.f32.mrf.mxu0
        %1105 = vdwg.mxu0
        %v1106 = vadd.f32 %v1092, %v1103
        %1107 = vmatpush.bf16.msra.mxu0 0
        %1108 = vmatpush.bf16.msra.mxu0 0
        %1109 = vmatpush.bf16.msra.mxu0 0
        %1110 = vmatpush.bf16.msra.mxu0 0
        %1111 = vmatpush.bf16.msra.mxu0 0
        %1112 = vmatpush.bf16.msra.mxu0 0
        %1113 = vmatpush.bf16.msra.mxu0 %v724
        %1114 = vmatpush.bf16.msra.mxu0 %v723
        %1115 = vmatmul.bf16.gmra.mxu0 %v942
        %v1116 = vpop.f32.mrf.mxu0
        %v1117 = vadd.f32 0.0, %v1116
        %v1118 = vpop.f32.mrf.mxu0
        %1119 = vdwg.mxu0
        %v1120 = vadd.f32 %v1106, %v1117
        %v1121 = vld [vmem:[#allocation2 + $0x4] sm:$0xe]
        %v1123 = vunpack.c.l.b16 %v1121
        %v1124 = vpack.c.b16 %v1123, %v1123
        %v1125 = vrot.slane %v1124, 1
        %v1127 = vsel %vm343, %v1125, 0
        %1129 = vmatpush.bf16.msra.mxu0 0
        %1130 = vmatpush.bf16.msra.mxu0 0
        %1131 = vmatpush.bf16.msra.mxu0 0
        %1132 = vmatpush.bf16.msra.mxu0 0
        %1133 = vmatpush.bf16.msra.mxu0 0
        %1134 = vmatpush.bf16.msra.mxu0 0
        %1135 = vmatpush.bf16.msra.mxu0 %v759
        %1136 = vmatpush.bf16.msra.mxu0 %v758
        %1137 = vmatmul.bf16.gmra.mxu0 %v1127
        %v1138 = vpop.f32.mrf.mxu0
        %v1139 = vadd.f32 0.0, %v1138
        %v1140 = vpop.f32.mrf.mxu0
        %1141 = vdwg.mxu0
        %v1142 = vadd.f32 %v1120, %v1139
        %v1143 = vadd.f32 %v1142, %v781
        %v1144 = vmax.f32 %v1143, 0.0
        %v1145 = vpack.c.bf16 %v1144, %v1144
        %v1146 = vld [vmem:[#allocation7 + $0x20] sm:$0xf]
        %v1147 = vld [vmem:[#allocation7 + $0x24] sm:$0xf]
        %v1148 = vld [vmem:[#allocation7 + $0x28] sm:$0xf]
        %v1149 = vld [vmem:[#allocation7 + $0x2c] sm:$0xf]
        %v1154 = vunpack.c.l.b16 %v1146
        %v1155 = vunpack.c.l.b16 %v1147
        %v1156 = vunpack.c.l.b16 %v1148
        %v1157 = vunpack.c.l.b16 %v1149
        %v1158 = vpack.c.b16 %v1155, %v1154
        %v1159 = vpack.c.b16 %v1157, %v1156
        %v1163 = vsel %vm343, %v1145, 0
        %1165 = vmatpush.bf16.msra.mxu0 0
        %1166 = vmatpush.bf16.msra.mxu0 0
        %1167 = vmatpush.bf16.msra.mxu0 0
        %1168 = vmatpush.bf16.msra.mxu0 0
        %1169 = vmatpush.bf16.msra.mxu0 0
        %1170 = vmatpush.bf16.msra.mxu0 0
        %1171 = vmatpush.bf16.msra.mxu0 %v1159
        %1172 = vmatpush.bf16.msra.mxu0 %v1158
        %1173 = vmatmul.bf16.gmra.mxu0 %v1163
        %v1174 = vpop.f32.mrf.mxu0
        %v1175 = vadd.f32 0.0, %v1174
        %v1176 = vpop.f32.mrf.mxu0
        %1177 = vdwg.mxu0
        %v1178 = vadd.f32 %v993, %v1175
        %1179 = vmatpush.bf16.msra.mxu0 0
        %1180 = vmatpush.bf16.msra.mxu0 0
        %1181 = vmatpush.bf16.msra.mxu0 0
        %1182 = vmatpush.bf16.msra.mxu0 0
        %1183 = vmatpush.bf16.msra.mxu0 0
        %1184 = vmatpush.bf16.msra.mxu0 0
        %1185 = vmatpush.bf16.msra.mxu0 %v479
        %1186 = vmatpush.bf16.msra.mxu0 %v478
        %1187 = vmatmul.bf16.gmra.mxu0 %v1022
        %v1188 = vpop.f32.mrf.mxu0
        %v1189 = vadd.f32 0.0, %v1188
        %v1190 = vpop.f32.mrf.mxu0
        %1191 = vdwg.mxu0
        %1192 = vmatpush.bf16.msra.mxu0 0
        %1193 = vmatpush.bf16.msra.mxu0 0
        %1194 = vmatpush.bf16.msra.mxu0 0
        %1195 = vmatpush.bf16.msra.mxu0 0
        %1196 = vmatpush.bf16.msra.mxu0 0
        %1197 = vmatpush.bf16.msra.mxu0 0
        %1198 = vmatpush.bf16.msra.mxu0 %v507
        %1199 = vmatpush.bf16.msra.mxu0 %v506
        %1200 = vmatmul.bf16.gmra.mxu0 %v848
        %v1201 = vpop.f32.mrf.mxu0
        %v1202 = vadd.f32 %v1189, %v1201
        %v1203 = vpop.f32.mrf.mxu0
        %1204 = vdwg.mxu0
        %1205 = vrot.lane.b32.xlu0 %v1068, 96
        %v1206 = vpop.permute.xlu0 %1205
        %v1208 = vsel %vm343, %v1206, 0
        %1210 = vmatpush.bf16.msra.mxu0 0
        %1211 = vmatpush.bf16.msra.mxu0 0
        %1212 = vmatpush.bf16.msra.mxu0 0
        %1213 = vmatpush.bf16.msra.mxu0 0
        %1214 = vmatpush.bf16.msra.mxu0 0
        %1215 = vmatpush.bf16.msra.mxu0 0
        %1216 = vmatpush.bf16.msra.mxu0 %v541
        %1217 = vmatpush.bf16.msra.mxu0 %v540
        %1218 = vmatmul.bf16.gmra.mxu0 %v1208
        %v1219 = vpop.f32.mrf.mxu0
        %v1220 = vadd.f32 0.0, %v1219
        %v1221 = vpop.f32.mrf.mxu0
        %1222 = vdwg.mxu0
        %v1223 = vadd.f32 %v1202, %v1220
        %1224 = vmatpush.bf16.msra.mxu0 0
        %1225 = vmatpush.bf16.msra.mxu0 0
        %1226 = vmatpush.bf16.msra.mxu0 0
        %1227 = vmatpush.bf16.msra.mxu0 0
        %1228 = vmatpush.bf16.msra.mxu0 0
        %1229 = vmatpush.bf16.msra.mxu0 0
        %1230 = vmatpush.bf16.msra.mxu0 %v581
        %1231 = vmatpush.bf16.msra.mxu0 %v580
        %1232 = vmatmul.bf16.gmra.mxu0 %v895
        %v1233 = vpop.f32.mrf.mxu0
        %v1234 = vadd.f32 0.0, %v1233
        %v1235 = vpop.f32.mrf.mxu0
        %1236 = vdwg.mxu0
        %v1237 = vadd.f32 %v1223, %v1234
        %1238 = vmatpush.bf16.msra.mxu0 0
        %1239 = vmatpush.bf16.msra.mxu0 0
        %1240 = vmatpush.bf16.msra.mxu0 0
        %1241 = vmatpush.bf16.msra.mxu0 0
        %1242 = vmatpush.bf16.msra.mxu0 0
        %1243 = vmatpush.bf16.msra.mxu0 0
        %1244 = vmatpush.bf16.msra.mxu0 %v616
        %1245 = vmatpush.bf16.msra.mxu0 %v615
        %1246 = vmatmul.bf16.gmra.mxu0 %v1077
        %v1247 = vpop.f32.mrf.mxu0
        %v1248 = vadd.f32 0.0, %v1247
        %v1249 = vpop.f32.mrf.mxu0
        %1250 = vdwg.mxu0
        %v1251 = vadd.f32 %v1237, %v1248
        %1252 = vrot.lane.b32.xlu0 %v1075, 96
        %v1253 = vpop.permute.xlu0 %1252
        %v1255 = vsel %vm343, %v1253, 0
        %1257 = vmatpush.bf16.msra.mxu0 0
        %1258 = vmatpush.bf16.msra.mxu0 0
        %1259 = vmatpush.bf16.msra.mxu0 0
        %1260 = vmatpush.bf16.msra.mxu0 0
        %1261 = vmatpush.bf16.msra.mxu0 0
        %1262 = vmatpush.bf16.msra.mxu0 0
        %1263 = vmatpush.bf16.msra.mxu0 %v651
        %1264 = vmatpush.bf16.msra.mxu0 %v650
        %1265 = vmatmul.bf16.gmra.mxu0 %v1255
        %v1266 = vpop.f32.mrf.mxu0
        %v1267 = vadd.f32 0.0, %v1266
        %v1268 = vpop.f32.mrf.mxu0
        %1269 = vdwg.mxu0
        %v1270 = vadd.f32 %v1251, %v1267
        %1271 = vmatpush.bf16.msra.mxu0 0
        %1272 = vmatpush.bf16.msra.mxu0 0
        %1273 = vmatpush.bf16.msra.mxu0 0
        %1274 = vmatpush.bf16.msra.mxu0 0
        %1275 = vmatpush.bf16.msra.mxu0 0
        %1276 = vmatpush.bf16.msra.mxu0 0
        %1277 = vmatpush.bf16.msra.mxu0 %v689
        %1278 = vmatpush.bf16.msra.mxu0 %v688
        %1279 = vmatmul.bf16.gmra.mxu0 %v942
        %v1280 = vpop.f32.mrf.mxu0
        %v1281 = vadd.f32 0.0, %v1280
        %v1282 = vpop.f32.mrf.mxu0
        %1283 = vdwg.mxu0
        %v1284 = vadd.f32 %v1270, %v1281
        %1285 = vmatpush.bf16.msra.mxu0 0
        %1286 = vmatpush.bf16.msra.mxu0 0
        %1287 = vmatpush.bf16.msra.mxu0 0
        %1288 = vmatpush.bf16.msra.mxu0 0
        %1289 = vmatpush.bf16.msra.mxu0 0
        %1290 = vmatpush.bf16.msra.mxu0 0
        %1291 = vmatpush.bf16.msra.mxu0 %v724
        %1292 = vmatpush.bf16.msra.mxu0 %v723
        %1293 = vmatmul.bf16.gmra.mxu0 %v1127
        %v1294 = vpop.f32.mrf.mxu0
        %v1295 = vadd.f32 0.0, %v1294
        %v1296 = vpop.f32.mrf.mxu0
        %1297 = vdwg.mxu0
        %v1298 = vadd.f32 %v1284, %v1295
        %1299 = vrot.lane.b32.xlu0 %v1125, 96
        %v1300 = vpop.permute.xlu0 %1299
        %v1302 = vsel %vm343, %v1300, 0
        %1304 = vmatpush.bf16.msra.mxu0 0
        %1305 = vmatpush.bf16.msra.mxu0 0
        %1306 = vmatpush.bf16.msra.mxu0 0
        %1307 = vmatpush.bf16.msra.mxu0 0
        %1308 = vmatpush.bf16.msra.mxu0 0
        %1309 = vmatpush.bf16.msra.mxu0 0
        %1310 = vmatpush.bf16.msra.mxu0 %v759
        %1311 = vmatpush.bf16.msra.mxu0 %v758
        %1312 = vmatmul.bf16.gmra.mxu0 %v1302
        %v1313 = vpop.f32.mrf.mxu0
        %v1314 = vadd.f32 0.0, %v1313
        %v1315 = vpop.f32.mrf.mxu0
        %1316 = vdwg.mxu0
        %v1317 = vadd.f32 %v1298, %v1314
        %v1318 = vadd.f32 %v1317, %v781
        %v1319 = vmax.f32 %v1318, 0.0
        %v1320 = vpack.c.bf16 %v1319, %v1319
        %v1321 = vld [vmem:[#allocation7 + $0x30] sm:$0xf]
        %v1322 = vld [vmem:[#allocation7 + $0x34] sm:$0xf]
        %v1323 = vld [vmem:[#allocation7 + $0x38] sm:$0xf]
        %v1324 = vld [vmem:[#allocation7 + $0x3c] sm:$0xf]
        %v1329 = vunpack.c.l.b16 %v1321
        %v1330 = vunpack.c.l.b16 %v1322
        %v1331 = vunpack.c.l.b16 %v1323
        %v1332 = vunpack.c.l.b16 %v1324
        %v1333 = vpack.c.b16 %v1330, %v1329
        %v1334 = vpack.c.b16 %v1332, %v1331
        %v1338 = vsel %vm343, %v1320, 0
        %1340 = vmatpush.bf16.msra.mxu0 0
        %1341 = vmatpush.bf16.msra.mxu0 0
        %1342 = vmatpush.bf16.msra.mxu0 0
        %1343 = vmatpush.bf16.msra.mxu0 0
        %1344 = vmatpush.bf16.msra.mxu0 0
        %1345 = vmatpush.bf16.msra.mxu0 0
        %1346 = vmatpush.bf16.msra.mxu0 %v1334
        %1347 = vmatpush.bf16.msra.mxu0 %v1333
        %1348 = vmatmul.bf16.gmra.mxu0 %v1338
        %v1349 = vpop.f32.mrf.mxu0
        %v1350 = vadd.f32 0.0, %v1349
        %v1351 = vpop.f32.mrf.mxu0
        %1352 = vdwg.mxu0
        %v1353 = vadd.f32 %v1178, %v1350
        %1354 = vmatpush.bf16.msra.mxu0 0
        %1355 = vmatpush.bf16.msra.mxu0 0
        %1356 = vmatpush.bf16.msra.mxu0 0
        %1357 = vmatpush.bf16.msra.mxu0 0
        %1358 = vmatpush.bf16.msra.mxu0 0
        %1359 = vmatpush.bf16.msra.mxu0 0
        %1360 = vmatpush.bf16.msra.mxu0 %v479
        %1361 = vmatpush.bf16.msra.mxu0 %v478
        %1362 = vmatmul.bf16.gmra.mxu0 %v1208
        %v1363 = vpop.f32.mrf.mxu0
        %v1364 = vadd.f32 0.0, %v1363
        %v1365 = vpop.f32.mrf.mxu0
        %1366 = vdwg.mxu0
        %1367 = vmatpush.bf16.msra.mxu0 0
        %1368 = vmatpush.bf16.msra.mxu0 0
        %1369 = vmatpush.bf16.msra.mxu0 0
        %1370 = vmatpush.bf16.msra.mxu0 0
        %1371 = vmatpush.bf16.msra.mxu0 0
        %1372 = vmatpush.bf16.msra.mxu0 0
        %1373 = vmatpush.bf16.msra.mxu0 %v507
        %1374 = vmatpush.bf16.msra.mxu0 %v506
        %1375 = vmatmul.bf16.gmra.mxu0 %v1022
        %v1376 = vpop.f32.mrf.mxu0
        %v1377 = vadd.f32 %v1364, %v1376
        %v1378 = vpop.f32.mrf.mxu0
        %1379 = vdwg.mxu0
        %1380 = vrot.lane.b32.xlu0 %v1068, 64
        %v1381 = vpop.permute.xlu0 %1380
        %v1383 = vsel %vm343, %v1381, 0
        %1385 = vmatpush.bf16.msra.mxu0 0
        %1386 = vmatpush.bf16.msra.mxu0 0
        %1387 = vmatpush.bf16.msra.mxu0 0
        %1388 = vmatpush.bf16.msra.mxu0 0
        %1389 = vmatpush.bf16.msra.mxu0 0
        %1390 = vmatpush.bf16.msra.mxu0 0
        %1391 = vmatpush.bf16.msra.mxu0 %v541
        %1392 = vmatpush.bf16.msra.mxu0 %v540
        %1393 = vmatmul.bf16.gmra.mxu0 %v1383
        %v1394 = vpop.f32.mrf.mxu0
        %v1395 = vadd.f32 0.0, %v1394
        %v1396 = vpop.f32.mrf.mxu0
        %1397 = vdwg.mxu0
        %v1398 = vadd.f32 %v1377, %v1395
        %1399 = vmatpush.bf16.msra.mxu0 0
        %1400 = vmatpush.bf16.msra.mxu0 0
        %1401 = vmatpush.bf16.msra.mxu0 0
        %1402 = vmatpush.bf16.msra.mxu0 0
        %1403 = vmatpush.bf16.msra.mxu0 0
        %1404 = vmatpush.bf16.msra.mxu0 0
        %1405 = vmatpush.bf16.msra.mxu0 %v581
        %1406 = vmatpush.bf16.msra.mxu0 %v580
        %1407 = vmatmul.bf16.gmra.mxu0 %v1077
        %v1408 = vpop.f32.mrf.mxu0
        %v1409 = vadd.f32 0.0, %v1408
        %v1410 = vpop.f32.mrf.mxu0
        %1411 = vdwg.mxu0
        %v1412 = vadd.f32 %v1398, %v1409
        %1413 = vmatpush.bf16.msra.mxu0 0
        %1414 = vmatpush.bf16.msra.mxu0 0
        %1415 = vmatpush.bf16.msra.mxu0 0
        %1416 = vmatpush.bf16.msra.mxu0 0
        %1417 = vmatpush.bf16.msra.mxu0 0
        %1418 = vmatpush.bf16.msra.mxu0 0
        %1419 = vmatpush.bf16.msra.mxu0 %v616
        %1420 = vmatpush.bf16.msra.mxu0 %v615
        %1421 = vmatmul.bf16.gmra.mxu0 %v1255
        %v1422 = vpop.f32.mrf.mxu0
        %v1423 = vadd.f32 0.0, %v1422
        %v1424 = vpop.f32.mrf.mxu0
        %1425 = vdwg.mxu0
        %v1426 = vadd.f32 %v1412, %v1423
        %1427 = vrot.lane.b32.xlu0 %v1075, 64
        %v1428 = vpop.permute.xlu0 %1427
        %v1430 = vsel %vm343, %v1428, 0
        %1432 = vmatpush.bf16.msra.mxu0 0
        %1433 = vmatpush.bf16.msra.mxu0 0
        %1434 = vmatpush.bf16.msra.mxu0 0
        %1435 = vmatpush.bf16.msra.mxu0 0
        %1436 = vmatpush.bf16.msra.mxu0 0
        %1437 = vmatpush.bf16.msra.mxu0 0
        %1438 = vmatpush.bf16.msra.mxu0 %v651
        %1439 = vmatpush.bf16.msra.mxu0 %v650
        %1440 = vmatmul.bf16.gmra.mxu0 %v1430
        %v1441 = vpop.f32.mrf.mxu0
        %v1442 = vadd.f32 0.0, %v1441
        %v1443 = vpop.f32.mrf.mxu0
        %1444 = vdwg.mxu0
        %v1445 = vadd.f32 %v1426, %v1442
        %1446 = vmatpush.bf16.msra.mxu0 0
        %1447 = vmatpush.bf16.msra.mxu0 0
        %1448 = vmatpush.bf16.msra.mxu0 0
        %1449 = vmatpush.bf16.msra.mxu0 0
        %1450 = vmatpush.bf16.msra.mxu0 0
        %1451 = vmatpush.bf16.msra.mxu0 0
        %1452 = vmatpush.bf16.msra.mxu0 %v689
        %1453 = vmatpush.bf16.msra.mxu0 %v688
        %1454 = vmatmul.bf16.gmra.mxu0 %v1127
        %v1455 = vpop.f32.mrf.mxu0
        %v1456 = vadd.f32 0.0, %v1455
        %v1457 = vpop.f32.mrf.mxu0
        %1458 = vdwg.mxu0
        %v1459 = vadd.f32 %v1445, %v1456
        %1460 = vmatpush.bf16.msra.mxu0 0
        %1461 = vmatpush.bf16.msra.mxu0 0
        %1462 = vmatpush.bf16.msra.mxu0 0
        %1463 = vmatpush.bf16.msra.mxu0 0
        %1464 = vmatpush.bf16.msra.mxu0 0
        %1465 = vmatpush.bf16.msra.mxu0 0
        %1466 = vmatpush.bf16.msra.mxu0 %v724
        %1467 = vmatpush.bf16.msra.mxu0 %v723
        %1468 = vmatmul.bf16.gmra.mxu0 %v1302
        %v1469 = vpop.f32.mrf.mxu0
        %v1470 = vadd.f32 0.0, %v1469
        %v1471 = vpop.f32.mrf.mxu0
        %1472 = vdwg.mxu0
        %v1473 = vadd.f32 %v1459, %v1470
        %1474 = vrot.lane.b32.xlu0 %v1125, 64
        %v1475 = vpop.permute.xlu0 %1474
        %v1477 = vsel %vm343, %v1475, 0
        %1479 = vmatpush.bf16.msra.mxu0 0
        %1480 = vmatpush.bf16.msra.mxu0 0
        %1481 = vmatpush.bf16.msra.mxu0 0
        %1482 = vmatpush.bf16.msra.mxu0 0
        %1483 = vmatpush.bf16.msra.mxu0 0
        %1484 = vmatpush.bf16.msra.mxu0 0
        %1485 = vmatpush.bf16.msra.mxu0 %v759
        %1486 = vmatpush.bf16.msra.mxu0 %v758
        %1487 = vmatmul.bf16.gmra.mxu0 %v1477
        %v1488 = vpop.f32.mrf.mxu0
        %v1489 = vadd.f32 0.0, %v1488
        %v1490 = vpop.f32.mrf.mxu0
        %1491 = vdwg.mxu0
        %v1492 = vadd.f32 %v1473, %v1489
        %v1493 = vadd.f32 %v1492, %v781
        %v1494 = vmax.f32 %v1493, 0.0
        %v1495 = vpack.c.bf16 %v1494, %v1494
        %v1496 = vld [vmem:[#allocation7 + $0x40] sm:$0xf]
        %v1497 = vld [vmem:[#allocation7 + $0x44] sm:$0xf]
        %v1498 = vld [vmem:[#allocation7 + $0x48] sm:$0xf]
        %v1499 = vld [vmem:[#allocation7 + $0x4c] sm:$0xf]
        %v1504 = vunpack.c.l.b16 %v1496
        %v1505 = vunpack.c.l.b16 %v1497
        %v1506 = vunpack.c.l.b16 %v1498
        %v1507 = vunpack.c.l.b16 %v1499
        %v1508 = vpack.c.b16 %v1505, %v1504
        %v1509 = vpack.c.b16 %v1507, %v1506
        %v1513 = vsel %vm343, %v1495, 0
        %1515 = vmatpush.bf16.msra.mxu0 0
        %1516 = vmatpush.bf16.msra.mxu0 0
        %1517 = vmatpush.bf16.msra.mxu0 0
        %1518 = vmatpush.bf16.msra.mxu0 0
        %1519 = vmatpush.bf16.msra.mxu0 0
        %1520 = vmatpush.bf16.msra.mxu0 0
        %1521 = vmatpush.bf16.msra.mxu0 %v1509
        %1522 = vmatpush.bf16.msra.mxu0 %v1508
        %1523 = vmatmul.bf16.gmra.mxu0 %v1513
        %v1524 = vpop.f32.mrf.mxu0
        %v1525 = vadd.f32 0.0, %v1524
        %v1526 = vpop.f32.mrf.mxu0
        %1527 = vdwg.mxu0
        %v1528 = vadd.f32 %v1353, %v1525
        %vm1529 = vcmask 258048
        %1530 = vst.msk [vmem:[%s323] sm:$0x1f] %vm1529, %v1528
        %p1531 = scmp.lt.s32.totalorder %s20, 1
        %s1532 = scalar_select %p1531, %s20, 1
        %s1533 = smul.addr %s1532, 8
        %s1534 = scalar_lea.vmem %s7, %s1533
        // Predicated region
        $region61: #{speech_embedding_forward.1} parent=47 // pred_check
          %p1535 = pneg %p190
        $region62: #{speech_embedding_forward.1} parent=47 // pred_check_branch
          %1537 = sbr.rel (%p1535) target = $region64
        $region63: #{speech_embedding_forward.1} parent=47 // pred_region
          _
        $region64: #{speech_embedding_forward.1} parent=47 // pred_fallthru
          _
      $region48: #{speech_embedding_forward.1} parent=5 // pred_fallthru
        _
      %p1538 = scmp.le.s32.totalorder 2, %s15
      // Predicated region
      $region65: #{speech_embedding_forward.1} parent=5 // pred_check
        %p1539 = pneg %p1538
      $region66: #{speech_embedding_forward.1} parent=5 // pred_check_branch
        %1541 = sbr.rel (%p1539) target = $region68
      $region67: #{speech_embedding_forward.1} parent=5 // pred_region
        %s1542 = ssub.s32 %s15, 2
        // Predicated region
        $region69: #{speech_embedding_forward.1} parent=67 // pred_check
          %p1543 = pneg %p196
        $region70: #{speech_embedding_forward.1} parent=67 // pred_check_branch
          %1545 = sbr.rel (%p1543) target = $region72
        $region71: #{speech_embedding_forward.1} parent=67 // pred_region
          %p1546 = scmp.lt.s32.totalorder %s21, 1
          %s1547 = scalar_select %p1546, %s21, 1
          %s1548 = smul.addr %s1547, 8
          %s1549 = scalar_lea.vmem %s7, %s1548
        $region72: #{speech_embedding_forward.1} parent=67 // pred_fallthru
          _
      $region68: #{speech_embedding_forward.1} parent=5 // pred_fallthru
        _
    $region6: #{speech_embedding_forward.1} parent=1 // loop_footer
      %s19 = sadd.s32 1, %s15
    $region7: #{speech_embedding_forward.1} parent=1 // loop_footer_branch
      %14 = sbr.rel target = $region3
    $region8: #{speech_embedding_forward.1} parent=1 // loop_exit
      _
    %1550 = vsyncpa [#allocation4], 1
    %s1551 = scalar_lea.sflag [#allocation4], 1
    %1552 = vsyncpa %s1551, 1
    %1553 = vsyncpa [#allocation6], 1

</llo_original>
